<compile_context>
chip_gen: v5e
topology: v5e:2x2
jax: 0.10.0
libtpu: 0.0.40
codegen_flags: <defaults>
</compile_context>

<pallas_src>
import jax
import jax.numpy as jnp
from jax import lax
from jax.experimental import pallas as pl
from jax.experimental.pallas import tpu as pltpu


_SUBLANES = {4: 8, 2: 16, 1: 32}          # second-minor packing per itemsize
_VMEM_LIVE_TARGET = 28 * 1024 * 1024      # target live VMEM (blocks x2 + temps)
_VMEM_LIMIT_BYTES = 48 * 1024 * 1024      # safe on v5e/v6e (128 MiB) and v7x (64 MiB)


def _round_up(a, b):
    return ((a + b - 1) // b) * b


# ----------------------------------------------------------------------------
# Primary kernel: NCHW-native, dense 2-D blocks, no wrapper transposes.
# ----------------------------------------------------------------------------
def _max_pool2d_nchw(x, p, H_out, W_out):
    N, C, Hc, Wc = x.shape                 # Hc = H_out*p, Wc = W_out*p (trimmed)
    n_rows = N * C * H_out
    row_len = p * Wc                       # the p input rows feeding one output row
    x2 = x.reshape(n_rows, row_len)        # free view: trimmed NCHW is contiguous

    itemsize = jnp.dtype(x.dtype).itemsize
    sub = _SUBLANES.get(itemsize, 8)
    in_row_bytes = _round_up(row_len, 128) * itemsize     # lane-padded VMEM row
    out_row_bytes = _round_up(W_out, 128) * itemsize
    # ~3x per row covers double-buffered in/out blocks plus in-kernel temporaries.
    tb = _VMEM_LIVE_TARGET // (3 * (in_row_bytes + out_row_bytes))
    tb = min(tb, max(n_rows // 4, 1))      # >= 4 grid steps when possible (v7x: 2 TCs x >= 2 steps)
    tb = max(sub, (tb // sub) * sub)       # dtype-aware sublane multiple
    if tb >= n_rows:
        tb = n_rows                        # full-extent block is always layout-legal
    grid = (pl.cdiv(n_rows, tb),)          # partial last block allowed — no divisor cliff

    def kernel(x_ref, o_ref):
        # kh: running max over the p contiguous row segments (contiguous lane slices).
        acc = x_ref[:, 0:Wc]
        for kh in range(1, p):
            acc = jnp.maximum(acc, x_ref[:, kh * Wc:(kh + 1) * Wc])
        # kw: max over the p lane-strided phases (stride == p).
        out = acc[:, 0::p]
        for kw in range(1, p):
            out = jnp.maximum(out, acc[:, kw::p])
        o_ref[...] = out

    out2 = pl.pallas_call(
        kernel,
        out_shape=jax.ShapeDtypeStruct((n_rows, W_out), x.dtype),
        grid=grid,
        in_specs=[pl.BlockSpec((tb, row_len), lambda i: (i, 0))],
        out_specs=pl.BlockSpec((tb, W_out), lambda i: (i, 0)),
        compiler_params=pltpu.CompilerParams(
            dimension_semantics=("parallel",),
            vmem_limit_bytes=_VMEM_LIMIT_BYTES,
        ),
    )(x2)
    # TODO(synk): when W_out << 128, pack several output rows into the lane dim
    # (lane-dense out_spec) so the (small) output stores are unmasked vst.
    return out2.reshape(N, C, H_out, W_out)


# ----------------------------------------------------------------------------
# Fallback (previously proven NHWC kernel) — only used if the NCHW path fails
# to lower (e.g. no lane-strided slice support in the local Mosaic build).
# ----------------------------------------------------------------------------
def _maxpool_nhwc_kernel(x_ref, o_ref):
    # x_ref: (tb, p, W_out, p, C)   o_ref: (tb, W_out, C)
    m = jnp.max(x_ref[...], axis=1)        # reduce kh
    o_ref[...] = jnp.max(m, axis=2)        # reduce kw


def _pick_row_tile(n_rows, block_row_bytes, budget_bytes):
    cap = max(1, budget_bytes // max(block_row_bytes, 1))
    tile = 1
    for d in range(1, n_rows + 1):
        if n_rows % d == 0 and d <= cap:
            tile = d
    return tile


def _max_pool2d_nhwc_fallback(x, p, H_out, W_out):
    N, C, Hc, Wc = x.shape
    xt = jnp.transpose(x, (0, 2, 3, 1))                    # (N, H, W, C)
    nho = N * H_out
    x5 = xt.reshape(nho, p, W_out, p, C)

    itemsize = jnp.dtype(x.dtype).itemsize
    sub = _SUBLANES.get(itemsize, 8)
    in_row = p * W_out * _round_up(p, sub) * _round_up(C, 128) * itemsize
    out_row = _round_up(W_out, sub) * _round_up(C, 128) * itemsize
    tb = _pick_row_tile(nho, in_row + out_row, 8 * 1024 * 1024)

    out5 = pl.pallas_call(
        _maxpool_nhwc_kernel,
        out_shape=jax.ShapeDtypeStruct((nho, W_out, C), x.dtype),
        grid=(nho // tb,),
        in_specs=[pl.BlockSpec((tb, p, W_out, p, C), lambda i: (i, 0, 0, 0, 0))],
        out_specs=pl.BlockSpec((tb, W_out, C), lambda i: (i, 0, 0)),
        compiler_params=pltpu.CompilerParams(
            dimension_semantics=("parallel",),
            vmem_limit_bytes=_VMEM_LIMIT_BYTES,
        ),
    )(x5)
    out = out5.reshape(N, H_out, W_out, C)
    return jnp.transpose(out, (0, 3, 1, 2))


# ----------------------------------------------------------------------------
# Public entry point: equivalent of Pool2DBlock(pool_size)(x) for NCHW x.
# ----------------------------------------------------------------------------
def max_pool2d_pallas(x, pool_size):
    p = int(pool_size)
    assert p >= 1
    N, C, H, W = x.shape
    H_out, W_out = H // p, W // p
    assert H_out >= 1 and W_out >= 1, "pool_size larger than spatial dims"
    # PyTorch (ceil_mode=False) drops trailing rows/cols that do not fill a window.
    if H_out * p != H or W_out * p != W:
        x = x[:, :, : H_out * p, : W_out * p]
    try:
        return _max_pool2d_nchw(x, p, H_out, W_out)
    except Exception:  # layout-capability fallback (keeps the op running everywhere)
        return _max_pool2d_nhwc_fallback(x, p, H_out, W_out)


def max_pool2d_ref(x, pool_size):
    """Pure-JAX reference matching F.max_pool2d(kernel=stride=pool_size)."""
    p = int(pool_size)
    return lax.reduce_window(
        x, -jnp.inf, lax.max,
        window_dimensions=(1, 1, p, p),
        window_strides=(1, 1, p, p),
        padding="VALID",
    )


if __name__ == "__main__":
    key = jax.random.PRNGKey(0)

    # Pool2DBlock(pool_size=2) on a small NCHW input.
    x = jax.random.normal(key, (2, 4, 16, 16), dtype=jnp.float32)
    out = jax.block_until_ready(max_pool2d_pallas(x, 2))
    ref = max_pool2d_ref(x, 2)
    assert out.shape == (2, 4, 8, 8), out.shape
    assert jnp.array_equal(out, ref), float(jnp.max(jnp.abs(out - ref)))

    # Odd spatial dims (trailing row/col truncation), pool_size=3, and a grid
    # whose last row-block is partial.
    x2 = jax.random.normal(jax.random.fold_in(key, 1), (1, 3, 19, 19), dtype=jnp.float32)
    out2 = jax.block_until_ready(max_pool2d_pallas(x2, 3))
    ref2 = max_pool2d_ref(x2, 3)
    assert out2.shape == (1, 3, 6, 6), out2.shape
    assert jnp.array_equal(out2, ref2)

    print("KERNEL_OK")
</pallas_src>

<mosaic_0001>
module attributes {stable_mosaic.version = 11 : i64} {
  func.func @_maxpool_nhwc_kernel(%arg0: i32, %arg1: memref<16x2x8x2x4xf32, #tpu.memory_space<vmem>>, %arg2: memref<16x8x4xf32, #tpu.memory_space<vmem>>) attributes {dimension_semantics = [#tpu.dimension_semantics<parallel>], iteration_bounds = array<i64: 1>, scalar_prefetch = 0 : i64, scratch_operands = 0 : i64, tpu.core_type = #tpu.core_type<tc>, window_params = [{transform_indices = @transform_0, window_bounds = array<i64: 16, 2, 8, 2, 4>}, {transform_indices = @transform_1, window_bounds = array<i64: 16, 8, 4>}]} {
    %c0 = arith.constant 0 : index
    %c0_0 = arith.constant 0 : index
    %c0_1 = arith.constant 0 : index
    %c0_2 = arith.constant 0 : index
    %c0_3 = arith.constant 0 : index
    %0 = vector.load %arg1[%c0, %c0_0, %c0_1, %c0_2, %c0_3] : memref<16x2x8x2x4xf32, #tpu.memory_space<vmem>>, vector<16x2x8x2x4xf32>
    %cst = arith.constant dense<0xFF800000> : vector<16x8x2x4xf32>
    %1 = vector.multi_reduction <maximumf>, %0, %cst [1] : vector<16x2x8x2x4xf32> to vector<16x8x2x4xf32>
    %cst_4 = arith.constant dense<0xFF800000> : vector<16x8x4xf32>
    %2 = vector.multi_reduction <maximumf>, %1, %cst_4 [2] : vector<16x8x2x4xf32> to vector<16x8x4xf32>
    %c0_5 = arith.constant 0 : index
    %c0_6 = arith.constant 0 : index
    %c0_7 = arith.constant 0 : index
    %3 = vector.load %arg2[%c0_5, %c0_6, %c0_7] : memref<16x8x4xf32, #tpu.memory_space<vmem>>, vector<16x8x4xf32>
    tpu.vector_store %arg2[%c0_5, %c0_6, %c0_7], %2 {strides = array<i32>} : memref<16x8x4xf32, #tpu.memory_space<vmem>>, vector<16x8x4xf32>,
    return
  }
  func.func @transform_0(%arg0: i32) -> (i32, i32, i32, i32, i32) {
    %c0_i32 = arith.constant 0 : i32
    %c0_i32_0 = arith.constant 0 : i32
    %c0_i32_1 = arith.constant 0 : i32
    %c0_i32_2 = arith.constant 0 : i32
    %c0_i32_3 = arith.constant 0 : i32
    return %arg0, %c0_i32, %c0_i32_0, %c0_i32_1, %c0_i32_2 : i32, i32, i32, i32, i32
  }
  func.func @transform_1(%arg0: i32) -> (i32, i32, i32) {
    %c0_i32 = arith.constant 0 : i32
    %c0_i32_0 = arith.constant 0 : i32
    %c0_i32_1 = arith.constant 0 : i32
    return %arg0, %c0_i32, %c0_i32_0 : i32, i32, i32
  }
}

</mosaic_0001>

<llo_original>
// kernel: tpu_custom_call.1
$region0: #{tpu_custom_call.1}
  #allocation0 [shape = 'u32[]', space=smem, size = 0x4, offset = 0x4, fixed_abs, tag = 'smem constant byte address 0x4 - core index']
  #allocation1 [shape = 'u32[72,128]{1,0:T(1,128)}', space=vmem, size = 0x9000, scoped, tag = 'internal scratch']
  %s0 = inlined_call_operand.vmem [shape: f32[16,2,8,2,4], index: 0, kind: input, shape index: {}]
  %s1 = inlined_call_operand.vmem [shape: f32[16,8,4], index: 1, kind: output, shape index: {}]
  %s2 = sld [smem:[#allocation0]]
  $region14: #{tpu_custom_call.1} parent=0
    _
  %s4 = ssub.s32 1, %s2
  %s5 = scalar_select 0, %s4, %s2
  // Predicated region
  $region2: #{tpu_custom_call.1} parent=0 // pred_check
    _
  $region3: #{tpu_custom_call.1} parent=0 // pred_check_branch
    %7 = sbr.rel (0) target = $region5
  $region4: #{tpu_custom_call.1} parent=0 // pred_region
    _
  $region5: #{tpu_custom_call.1} parent=0 // pred_fallthru
    _
  %v8 = vld [vmem:[%s0] sm:$0x3]
  %v9 = vld [vmem:[%s0 + $0x2] sm:$0x3]
  %v10 = vld [vmem:[%s0 + $0x4] sm:$0x3]
  %v11 = vld [vmem:[%s0 + $0x6] sm:$0x3]
  %v12 = vld [vmem:[%s0 + $0x8] sm:$0x3]
  %v13 = vld [vmem:[%s0 + $0xa] sm:$0x3]
  %v14 = vld [vmem:[%s0 + $0xc] sm:$0x3]
  %v15 = vld [vmem:[%s0 + $0xe] sm:$0x3]
  %v16 = vld [vmem:[%s0 + $0x10] sm:$0x3]
  %v17 = vld [vmem:[%s0 + $0x12] sm:$0x3]
  %v18 = vld [vmem:[%s0 + $0x14] sm:$0x3]
  %v19 = vld [vmem:[%s0 + $0x16] sm:$0x3]
  %v20 = vld [vmem:[%s0 + $0x18] sm:$0x3]
  %v21 = vld [vmem:[%s0 + $0x1a] sm:$0x3]
  %v22 = vld [vmem:[%s0 + $0x1c] sm:$0x3]
  %v23 = vld [vmem:[%s0 + $0x1e] sm:$0x3]
  %v24 = vld [vmem:[%s0 + $0x20] sm:$0x3]
  %v25 = vld [vmem:[%s0 + $0x22] sm:$0x3]
  %v26 = vld [vmem:[%s0 + $0x24] sm:$0x3]
  %v27 = vld [vmem:[%s0 + $0x26] sm:$0x3]
  %v28 = vld [vmem:[%s0 + $0x28] sm:$0x3]
  %v29 = vld [vmem:[%s0 + $0x2a] sm:$0x3]
  %v30 = vld [vmem:[%s0 + $0x2c] sm:$0x3]
  %v31 = vld [vmem:[%s0 + $0x2e] sm:$0x3]
  %v32 = vld [vmem:[%s0 + $0x30] sm:$0x3]
  %v33 = vld [vmem:[%s0 + $0x32] sm:$0x3]
  %v34 = vld [vmem:[%s0 + $0x34] sm:$0x3]
  %v35 = vld [vmem:[%s0 + $0x36] sm:$0x3]
  %v36 = vld [vmem:[%s0 + $0x38] sm:$0x3]
  %v37 = vld [vmem:[%s0 + $0x3a] sm:$0x3]
  %v38 = vld [vmem:[%s0 + $0x3c] sm:$0x3]
  %v39 = vld [vmem:[%s0 + $0x3e] sm:$0x3]
  %v40 = vld [vmem:[%s0 + $0x40] sm:$0x3]
  %v41 = vld [vmem:[%s0 + $0x42] sm:$0x3]
  %v42 = vld [vmem:[%s0 + $0x44] sm:$0x3]
  %v43 = vld [vmem:[%s0 + $0x46] sm:$0x3]
  %v44 = vld [vmem:[%s0 + $0x48] sm:$0x3]
  %v45 = vld [vmem:[%s0 + $0x4a] sm:$0x3]
  %v46 = vld [vmem:[%s0 + $0x4c] sm:$0x3]
  %v47 = vld [vmem:[%s0 + $0x4e] sm:$0x3]
  %v48 = vld [vmem:[%s0 + $0x50] sm:$0x3]
  %v49 = vld [vmem:[%s0 + $0x52] sm:$0x3]
  %v50 = vld [vmem:[%s0 + $0x54] sm:$0x3]
  %v51 = vld [vmem:[%s0 + $0x56] sm:$0x3]
  %v52 = vld [vmem:[%s0 + $0x58] sm:$0x3]
  %v53 = vld [vmem:[%s0 + $0x5a] sm:$0x3]
  %v54 = vld [vmem:[%s0 + $0x5c] sm:$0x3]
  %v55 = vld [vmem:[%s0 + $0x5e] sm:$0x3]
  %v56 = vld [vmem:[%s0 + $0x60] sm:$0x3]
  %v57 = vld [vmem:[%s0 + $0x62] sm:$0x3]
  %v58 = vld [vmem:[%s0 + $0x64] sm:$0x3]
  %v59 = vld [vmem:[%s0 + $0x66] sm:$0x3]
  %v60 = vld [vmem:[%s0 + $0x68] sm:$0x3]
  %v61 = vld [vmem:[%s0 + $0x6a] sm:$0x3]
  %v62 = vld [vmem:[%s0 + $0x6c] sm:$0x3]
  %v63 = vld [vmem:[%s0 + $0x6e] sm:$0x3]
  %v64 = vld [vmem:[%s0 + $0x70] sm:$0x3]
  %v65 = vld [vmem:[%s0 + $0x72] sm:$0x3]
  %v66 = vld [vmem:[%s0 + $0x74] sm:$0x3]
  %v67 = vld [vmem:[%s0 + $0x76] sm:$0x3]
  %v68 = vld [vmem:[%s0 + $0x78] sm:$0x3]
  %v69 = vld [vmem:[%s0 + $0x7a] sm:$0x3]
  %v70 = vld [vmem:[%s0 + $0x7c] sm:$0x3]
  %v71 = vld [vmem:[%s0 + $0x7e] sm:$0x3]
  %v72 = vld [vmem:[%s0 + $0x80] sm:$0x3]
  %v73 = vld [vmem:[%s0 + $0x82] sm:$0x3]
  %v74 = vld [vmem:[%s0 + $0x84] sm:$0x3]
  %v75 = vld [vmem:[%s0 + $0x86] sm:$0x3]
  %v76 = vld [vmem:[%s0 + $0x88] sm:$0x3]
  %v77 = vld [vmem:[%s0 + $0x8a] sm:$0x3]
  %v78 = vld [vmem:[%s0 + $0x8c] sm:$0x3]
  %v79 = vld [vmem:[%s0 + $0x8e] sm:$0x3]
  %v80 = vld [vmem:[%s0 + $0x90] sm:$0x3]
  %v81 = vld [vmem:[%s0 + $0x92] sm:$0x3]
  %v82 = vld [vmem:[%s0 + $0x94] sm:$0x3]
  %v83 = vld [vmem:[%s0 + $0x96] sm:$0x3]
  %v84 = vld [vmem:[%s0 + $0x98] sm:$0x3]
  %v85 = vld [vmem:[%s0 + $0x9a] sm:$0x3]
  %v86 = vld [vmem:[%s0 + $0x9c] sm:$0x3]
  %v87 = vld [vmem:[%s0 + $0x9e] sm:$0x3]
  %v88 = vld [vmem:[%s0 + $0xa0] sm:$0x3]
  %v89 = vld [vmem:[%s0 + $0xa2] sm:$0x3]
  %v90 = vld [vmem:[%s0 + $0xa4] sm:$0x3]
  %v91 = vld [vmem:[%s0 + $0xa6] sm:$0x3]
  %v92 = vld [vmem:[%s0 + $0xa8] sm:$0x3]
  %v93 = vld [vmem:[%s0 + $0xaa] sm:$0x3]
  %v94 = vld [vmem:[%s0 + $0xac] sm:$0x3]
  %v95 = vld [vmem:[%s0 + $0xae] sm:$0x3]
  %v96 = vld [vmem:[%s0 + $0xb0] sm:$0x3]
  %v97 = vld [vmem:[%s0 + $0xb2] sm:$0x3]
  %v98 = vld [vmem:[%s0 + $0xb4] sm:$0x3]
  %v99 = vld [vmem:[%s0 + $0xb6] sm:$0x3]
  %v100 = vld [vmem:[%s0 + $0xb8] sm:$0x3]
  %v101 = vld [vmem:[%s0 + $0xba] sm:$0x3]
  %v102 = vld [vmem:[%s0 + $0xbc] sm:$0x3]
  %v103 = vld [vmem:[%s0 + $0xbe] sm:$0x3]
  %v104 = vld [vmem:[%s0 + $0xc0] sm:$0x3]
  %v105 = vld [vmem:[%s0 + $0xc2] sm:$0x3]
  %v106 = vld [vmem:[%s0 + $0xc4] sm:$0x3]
  %v107 = vld [vmem:[%s0 + $0xc6] sm:$0x3]
  %v108 = vld [vmem:[%s0 + $0xc8] sm:$0x3]
  %v109 = vld [vmem:[%s0 + $0xca] sm:$0x3]
  %v110 = vld [vmem:[%s0 + $0xcc] sm:$0x3]
  %v111 = vld [vmem:[%s0 + $0xce] sm:$0x3]
  %v112 = vld [vmem:[%s0 + $0xd0] sm:$0x3]
  %v113 = vld [vmem:[%s0 + $0xd2] sm:$0x3]
  %v114 = vld [vmem:[%s0 + $0xd4] sm:$0x3]
  %v115 = vld [vmem:[%s0 + $0xd6] sm:$0x3]
  %v116 = vld [vmem:[%s0 + $0xd8] sm:$0x3]
  %v117 = vld [vmem:[%s0 + $0xda] sm:$0x3]
  %v118 = vld [vmem:[%s0 + $0xdc] sm:$0x3]
  %v119 = vld [vmem:[%s0 + $0xde] sm:$0x3]
  %v120 = vld [vmem:[%s0 + $0xe0] sm:$0x3]
  %v121 = vld [vmem:[%s0 + $0xe2] sm:$0x3]
  %v122 = vld [vmem:[%s0 + $0xe4] sm:$0x3]
  %v123 = vld [vmem:[%s0 + $0xe6] sm:$0x3]
  %v124 = vld [vmem:[%s0 + $0xe8] sm:$0x3]
  %v125 = vld [vmem:[%s0 + $0xea] sm:$0x3]
  %v126 = vld [vmem:[%s0 + $0xec] sm:$0x3]
  %v127 = vld [vmem:[%s0 + $0xee] sm:$0x3]
  %v128 = vld [vmem:[%s0 + $0xf0] sm:$0x3]
  %v129 = vld [vmem:[%s0 + $0xf2] sm:$0x3]
  %v130 = vld [vmem:[%s0 + $0xf4] sm:$0x3]
  %v131 = vld [vmem:[%s0 + $0xf6] sm:$0x3]
  %v132 = vld [vmem:[%s0 + $0xf8] sm:$0x3]
  %v133 = vld [vmem:[%s0 + $0xfa] sm:$0x3]
  %v134 = vld [vmem:[%s0 + $0xfc] sm:$0x3]
  %v135 = vld [vmem:[%s0 + $0xfe] sm:$0x3]
  %v136 = vld [vmem:[%s0 + $0x100] sm:$0x3]
  %v137 = vld [vmem:[%s0 + $0x102] sm:$0x3]
  %v138 = vld [vmem:[%s0 + $0x104] sm:$0x3]
  %v139 = vld [vmem:[%s0 + $0x106] sm:$0x3]
  %v140 = vld [vmem:[%s0 + $0x108] sm:$0x3]
  %v141 = vld [vmem:[%s0 + $0x10a] sm:$0x3]
  %v142 = vld [vmem:[%s0 + $0x10c] sm:$0x3]
  %v143 = vld [vmem:[%s0 + $0x10e] sm:$0x3]
  %v144 = vld [vmem:[%s0 + $0x110] sm:$0x3]
  %v145 = vld [vmem:[%s0 + $0x112] sm:$0x3]
  %v146 = vld [vmem:[%s0 + $0x114] sm:$0x3]
  %v147 = vld [vmem:[%s0 + $0x116] sm:$0x3]
  %v148 = vld [vmem:[%s0 + $0x118] sm:$0x3]
  %v149 = vld [vmem:[%s0 + $0x11a] sm:$0x3]
  %v150 = vld [vmem:[%s0 + $0x11c] sm:$0x3]
  %v151 = vld [vmem:[%s0 + $0x11e] sm:$0x3]
  %v152 = vld [vmem:[%s0 + $0x120] sm:$0x3]
  %v153 = vld [vmem:[%s0 + $0x122] sm:$0x3]
  %v154 = vld [vmem:[%s0 + $0x124] sm:$0x3]
  %v155 = vld [vmem:[%s0 + $0x126] sm:$0x3]
  %v156 = vld [vmem:[%s0 + $0x128] sm:$0x3]
  %v157 = vld [vmem:[%s0 + $0x12a] sm:$0x3]
  %v158 = vld [vmem:[%s0 + $0x12c] sm:$0x3]
  %v159 = vld [vmem:[%s0 + $0x12e] sm:$0x3]
  %v160 = vld [vmem:[%s0 + $0x130] sm:$0x3]
  %v161 = vld [vmem:[%s0 + $0x132] sm:$0x3]
  %v162 = vld [vmem:[%s0 + $0x134] sm:$0x3]
  %v163 = vld [vmem:[%s0 + $0x136] sm:$0x3]
  %v164 = vld [vmem:[%s0 + $0x138] sm:$0x3]
  %v165 = vld [vmem:[%s0 + $0x13a] sm:$0x3]
  %v166 = vld [vmem:[%s0 + $0x13c] sm:$0x3]
  %v167 = vld [vmem:[%s0 + $0x13e] sm:$0x3]
  %v168 = vld [vmem:[%s0 + $0x140] sm:$0x3]
  %v169 = vld [vmem:[%s0 + $0x142] sm:$0x3]
  %v170 = vld [vmem:[%s0 + $0x144] sm:$0x3]
  %v171 = vld [vmem:[%s0 + $0x146] sm:$0x3]
  %v172 = vld [vmem:[%s0 + $0x148] sm:$0x3]
  %v173 = vld [vmem:[%s0 + $0x14a] sm:$0x3]
  %v174 = vld [vmem:[%s0 + $0x14c] sm:$0x3]
  %v175 = vld [vmem:[%s0 + $0x14e] sm:$0x3]
  %v176 = vld [vmem:[%s0 + $0x150] sm:$0x3]
  %v177 = vld [vmem:[%s0 + $0x152] sm:$0x3]
  %v178 = vld [vmem:[%s0 + $0x154] sm:$0x3]
  %v179 = vld [vmem:[%s0 + $0x156] sm:$0x3]
  %v180 = vld [vmem:[%s0 + $0x158] sm:$0x3]
  %v181 = vld [vmem:[%s0 + $0x15a] sm:$0x3]
  %v182 = vld [vmem:[%s0 + $0x15c] sm:$0x3]
  %v183 = vld [vmem:[%s0 + $0x15e] sm:$0x3]
  %v184 = vld [vmem:[%s0 + $0x160] sm:$0x3]
  %v185 = vld [vmem:[%s0 + $0x162] sm:$0x3]
  %v186 = vld [vmem:[%s0 + $0x164] sm:$0x3]
  %v187 = vld [vmem:[%s0 + $0x166] sm:$0x3]
  %v188 = vld [vmem:[%s0 + $0x168] sm:$0x3]
  %v189 = vld [vmem:[%s0 + $0x16a] sm:$0x3]
  %v190 = vld [vmem:[%s0 + $0x16c] sm:$0x3]
  %v191 = vld [vmem:[%s0 + $0x16e] sm:$0x3]
  %v192 = vld [vmem:[%s0 + $0x170] sm:$0x3]
  %v193 = vld [vmem:[%s0 + $0x172] sm:$0x3]
  %v194 = vld [vmem:[%s0 + $0x174] sm:$0x3]
  %v195 = vld [vmem:[%s0 + $0x176] sm:$0x3]
  %v196 = vld [vmem:[%s0 + $0x178] sm:$0x3]
  %v197 = vld [vmem:[%s0 + $0x17a] sm:$0x3]
  %v198 = vld [vmem:[%s0 + $0x17c] sm:$0x3]
  %v199 = vld [vmem:[%s0 + $0x17e] sm:$0x3]
  %v200 = vld [vmem:[%s0 + $0x180] sm:$0x3]
  %v201 = vld [vmem:[%s0 + $0x182] sm:$0x3]
  %v202 = vld [vmem:[%s0 + $0x184] sm:$0x3]
  %v203 = vld [vmem:[%s0 + $0x186] sm:$0x3]
  %v204 = vld [vmem:[%s0 + $0x188] sm:$0x3]
  %v205 = vld [vmem:[%s0 + $0x18a] sm:$0x3]
  %v206 = vld [vmem:[%s0 + $0x18c] sm:$0x3]
  %v207 = vld [vmem:[%s0 + $0x18e] sm:$0x3]
  %v208 = vld [vmem:[%s0 + $0x190] sm:$0x3]
  %v209 = vld [vmem:[%s0 + $0x192] sm:$0x3]
  %v210 = vld [vmem:[%s0 + $0x194] sm:$0x3]
  %v211 = vld [vmem:[%s0 + $0x196] sm:$0x3]
  %v212 = vld [vmem:[%s0 + $0x198] sm:$0x3]
  %v213 = vld [vmem:[%s0 + $0x19a] sm:$0x3]
  %v214 = vld [vmem:[%s0 + $0x19c] sm:$0x3]
  %v215 = vld [vmem:[%s0 + $0x19e] sm:$0x3]
  %v216 = vld [vmem:[%s0 + $0x1a0] sm:$0x3]
  %v217 = vld [vmem:[%s0 + $0x1a2] sm:$0x3]
  %v218 = vld [vmem:[%s0 + $0x1a4] sm:$0x3]
  %v219 = vld [vmem:[%s0 + $0x1a6] sm:$0x3]
  %v220 = vld [vmem:[%s0 + $0x1a8] sm:$0x3]
  %v221 = vld [vmem:[%s0 + $0x1aa] sm:$0x3]
  %v222 = vld [vmem:[%s0 + $0x1ac] sm:$0x3]
  %v223 = vld [vmem:[%s0 + $0x1ae] sm:$0x3]
  %v224 = vld [vmem:[%s0 + $0x1b0] sm:$0x3]
  %v225 = vld [vmem:[%s0 + $0x1b2] sm:$0x3]
  %v226 = vld [vmem:[%s0 + $0x1b4] sm:$0x3]
  %v227 = vld [vmem:[%s0 + $0x1b6] sm:$0x3]
  %v228 = vld [vmem:[%s0 + $0x1b8] sm:$0x3]
  %v229 = vld [vmem:[%s0 + $0x1ba] sm:$0x3]
  %v230 = vld [vmem:[%s0 + $0x1bc] sm:$0x3]
  %v231 = vld [vmem:[%s0 + $0x1be] sm:$0x3]
  %v232 = vld [vmem:[%s0 + $0x1c0] sm:$0x3]
  %v233 = vld [vmem:[%s0 + $0x1c2] sm:$0x3]
  %v234 = vld [vmem:[%s0 + $0x1c4] sm:$0x3]
  %v235 = vld [vmem:[%s0 + $0x1c6] sm:$0x3]
  %v236 = vld [vmem:[%s0 + $0x1c8] sm:$0x3]
  %v237 = vld [vmem:[%s0 + $0x1ca] sm:$0x3]
  %v238 = vld [vmem:[%s0 + $0x1cc] sm:$0x3]
  %v239 = vld [vmem:[%s0 + $0x1ce] sm:$0x3]
  %v240 = vld [vmem:[%s0 + $0x1d0] sm:$0x3]
  %v241 = vld [vmem:[%s0 + $0x1d2] sm:$0x3]
  %v242 = vld [vmem:[%s0 + $0x1d4] sm:$0x3]
  %v243 = vld [vmem:[%s0 + $0x1d6] sm:$0x3]
  %v244 = vld [vmem:[%s0 + $0x1d8] sm:$0x3]
  %v245 = vld [vmem:[%s0 + $0x1da] sm:$0x3]
  %v246 = vld [vmem:[%s0 + $0x1dc] sm:$0x3]
  %v247 = vld [vmem:[%s0 + $0x1de] sm:$0x3]
  %v248 = vld [vmem:[%s0 + $0x1e0] sm:$0x3]
  %v249 = vld [vmem:[%s0 + $0x1e2] sm:$0x3]
  %v250 = vld [vmem:[%s0 + $0x1e4] sm:$0x3]
  %v251 = vld [vmem:[%s0 + $0x1e6] sm:$0x3]
  %v252 = vld [vmem:[%s0 + $0x1e8] sm:$0x3]
  %v253 = vld [vmem:[%s0 + $0x1ea] sm:$0x3]
  %v254 = vld [vmem:[%s0 + $0x1ec] sm:$0x3]
  %v255 = vld [vmem:[%s0 + $0x1ee] sm:$0x3]
  %v256 = vld [vmem:[%s0 + $0x1f0] sm:$0x3]
  %v257 = vld [vmem:[%s0 + $0x1f2] sm:$0x3]
  %v258 = vld [vmem:[%s0 + $0x1f4] sm:$0x3]
  %v259 = vld [vmem:[%s0 + $0x1f6] sm:$0x3]
  %v260 = vld [vmem:[%s0 + $0x1f8] sm:$0x3]
  %v261 = vld [vmem:[%s0 + $0x1fa] sm:$0x3]
  %v262 = vld [vmem:[%s0 + $0x1fc] sm:$0x3]
  %v263 = vld [vmem:[%s0 + $0x1fe] sm:$0x3]
  %vm264 = vcmask 25600
  %v265 = vsel %vm264, %v8, -inf
  %v266 = vsel %vm264, %v16, -inf
  %v267 = vmax.f32 %v265, %v266
  %v268 = vsel %vm264, %v9, -inf
  %v269 = vsel %vm264, %v17, -inf
  %v270 = vmax.f32 %v268, %v269
  %v271 = vsel %vm264, %v10, -inf
  %v272 = vsel %vm264, %v18, -inf
  %v273 = vmax.f32 %v271, %v272
  %v274 = vsel %vm264, %v11, -inf
  %v275 = vsel %vm264, %v19, -inf
  %v276 = vmax.f32 %v274, %v275
  %v277 = vsel %vm264, %v12, -inf
  %v278 = vsel %vm264, %v20, -inf
  %v279 = vmax.f32 %v277, %v278
  %v280 = vsel %vm264, %v13, -inf
  %v281 = vsel %vm264, %v21, -inf
  %v282 = vmax.f32 %v280, %v281
  %v283 = vsel %vm264, %v14, -inf
  %v284 = vsel %vm264, %v22, -inf
  %v285 = vmax.f32 %v283, %v284
  %v286 = vsel %vm264, %v15, -inf
  %v287 = vsel %vm264, %v23, -inf
  %v288 = vmax.f32 %v286, %v287
  %v289 = vsel %vm264, %v24, -inf
  %v290 = vsel %vm264, %v32, -inf
  %v291 = vmax.f32 %v289, %v290
  %v292 = vsel %vm264, %v25, -inf
  %v293 = vsel %vm264, %v33, -inf
  %v294 = vmax.f32 %v292, %v293
  %v295 = vsel %vm264, %v26, -inf
  %v296 = vsel %vm264, %v34, -inf
  %v297 = vmax.f32 %v295, %v296
  %v298 = vsel %vm264, %v27, -inf
  %v299 = vsel %vm264, %v35, -inf
  %v300 = vmax.f32 %v298, %v299
  %v301 = vsel %vm264, %v28, -inf
  %v302 = vsel %vm264, %v36, -inf
  %v303 = vmax.f32 %v301, %v302
  %v304 = vsel %vm264, %v29, -inf
  %v305 = vsel %vm264, %v37, -inf
  %v306 = vmax.f32 %v304, %v305
  %v307 = vsel %vm264, %v30, -inf
  %v308 = vsel %vm264, %v38, -inf
  %v309 = vmax.f32 %v307, %v308
  %v310 = vsel %vm264, %v31, -inf
  %v311 = vsel %vm264, %v39, -inf
  %v312 = vmax.f32 %v310, %v311
  %v313 = vsel %vm264, %v40, -inf
  %v314 = vsel %vm264, %v48, -inf
  %v315 = vmax.f32 %v313, %v314
  %v316 = vsel %vm264, %v41, -inf
  %v317 = vsel %vm264, %v49, -inf
  %v318 = vmax.f32 %v316, %v317
  %v319 = vsel %vm264, %v42, -inf
  %v320 = vsel %vm264, %v50, -inf
  %v321 = vmax.f32 %v319, %v320
  %v322 = vsel %vm264, %v43, -inf
  %v323 = vsel %vm264, %v51, -inf
  %v324 = vmax.f32 %v322, %v323
  %v325 = vsel %vm264, %v44, -inf
  %v326 = vsel %vm264, %v52, -inf
  %v327 = vmax.f32 %v325, %v326
  %v328 = vsel %vm264, %v45, -inf
  %v329 = vsel %vm264, %v53, -inf
  %v330 = vmax.f32 %v328, %v329
  %v331 = vsel %vm264, %v46, -inf
  %v332 = vsel %vm264, %v54, -inf
  %v333 = vmax.f32 %v331, %v332
  %v334 = vsel %vm264, %v47, -inf
  %v335 = vsel %vm264, %v55, -inf
  %v336 = vmax.f32 %v334, %v335
  %v337 = vsel %vm264, %v56, -inf
  %v338 = vsel %vm264, %v64, -inf
  %v339 = vmax.f32 %v337, %v338
  %v340 = vsel %vm264, %v57, -inf
  %v341 = vsel %vm264, %v65, -inf
  %v342 = vmax.f32 %v340, %v341
  %v343 = vsel %vm264, %v58, -inf
  %v344 = vsel %vm264, %v66, -inf
  %v345 = vmax.f32 %v343, %v344
  %v346 = vsel %vm264, %v59, -inf
  %v347 = vsel %vm264, %v67, -inf
  %v348 = vmax.f32 %v346, %v347
  %v349 = vsel %vm264, %v60, -inf
  %v350 = vsel %vm264, %v68, -inf
  %v351 = vmax.f32 %v349, %v350
  %v352 = vsel %vm264, %v61, -inf
  %v353 = vsel %vm264, %v69, -inf
  %v354 = vmax.f32 %v352, %v353
  %v355 = vsel %vm264, %v62, -inf
  %v356 = vsel %vm264, %v70, -inf
  %v357 = vmax.f32 %v355, %v356
  %v358 = vsel %vm264, %v63, -inf
  %v359 = vsel %vm264, %v71, -inf
  %v360 = vmax.f32 %v358, %v359
  %v361 = vsel %vm264, %v72, -inf
  %v362 = vsel %vm264, %v80, -inf
  %v363 = vmax.f32 %v361, %v362
  %v364 = vsel %vm264, %v73, -inf
  %v365 = vsel %vm264, %v81, -inf
  %v366 = vmax.f32 %v364, %v365
  %v367 = vsel %vm264, %v74, -inf
  %v368 = vsel %vm264, %v82, -inf
  %v369 = vmax.f32 %v367, %v368
  %v370 = vsel %vm264, %v75, -inf
  %v371 = vsel %vm264, %v83, -inf
  %v372 = vmax.f32 %v370, %v371
  %v373 = vsel %vm264, %v76, -inf
  %v374 = vsel %vm264, %v84, -inf
  %v375 = vmax.f32 %v373, %v374
  %v376 = vsel %vm264, %v77, -inf
  %v377 = vsel %vm264, %v85, -inf
  %v378 = vmax.f32 %v376, %v377
  %v379 = vsel %vm264, %v78, -inf
  %v380 = vsel %vm264, %v86, -inf
  %v381 = vmax.f32 %v379, %v380
  %v382 = vsel %vm264, %v79, -inf
  %v383 = vsel %vm264, %v87, -inf
  %v384 = vmax.f32 %v382, %v383
  %v385 = vsel %vm264, %v88, -inf
  %v386 = vsel %vm264, %v96, -inf
  %v387 = vmax.f32 %v385, %v386
  %v388 = vsel %vm264, %v89, -inf
  %v389 = vsel %vm264, %v97, -inf
  %v390 = vmax.f32 %v388, %v389
  %v391 = vsel %vm264, %v90, -inf
  %v392 = vsel %vm264, %v98, -inf
  %v393 = vmax.f32 %v391, %v392
  %v394 = vsel %vm264, %v91, -inf
  %v395 = vsel %vm264, %v99, -inf
  %v396 = vmax.f32 %v394, %v395
  %v397 = vsel %vm264, %v92, -inf
  %v398 = vsel %vm264, %v100, -inf
  %v399 = vmax.f32 %v397, %v398
  %v400 = vsel %vm264, %v93, -inf
  %v401 = vsel %vm264, %v101, -inf
  %v402 = vmax.f32 %v400, %v401
  %v403 = vsel %vm264, %v94, -inf
  %v404 = vsel %vm264, %v102, -inf
  %v405 = vmax.f32 %v403, %v404
  %v406 = vsel %vm264, %v95, -inf
  %v407 = vsel %vm264, %v103, -inf
  %v408 = vmax.f32 %v406, %v407
  %v409 = vsel %vm264, %v104, -inf
  %v410 = vsel %vm264, %v112, -inf
  %v411 = vmax.f32 %v409, %v410
  %v412 = vsel %vm264, %v105, -inf
  %v413 = vsel %vm264, %v113, -inf
  %v414 = vmax.f32 %v412, %v413
  %v415 = vsel %vm264, %v106, -inf
  %v416 = vsel %vm264, %v114, -inf
  %v417 = vmax.f32 %v415, %v416
  %v418 = vsel %vm264, %v107, -inf
  %v419 = vsel %vm264, %v115, -inf
  %v420 = vmax.f32 %v418, %v419
  %v421 = vsel %vm264, %v108, -inf
  %v422 = vsel %vm264, %v116, -inf
  %v423 = vmax.f32 %v421, %v422
  %v424 = vsel %vm264, %v109, -inf
  %v425 = vsel %vm264, %v117, -inf
  %v426 = vmax.f32 %v424, %v425
  %v427 = vsel %vm264, %v110, -inf
  %v428 = vsel %vm264, %v118, -inf
  %v429 = vmax.f32 %v427, %v428
  %v430 = vsel %vm264, %v111, -inf
  %v431 = vsel %vm264, %v119, -inf
  %v432 = vmax.f32 %v430, %v431
  %v433 = vsel %vm264, %v120, -inf
  %v434 = vsel %vm264, %v128, -inf
  %v435 = vmax.f32 %v433, %v434
  %v436 = vsel %vm264, %v121, -inf
  %v437 = vsel %vm264, %v129, -inf
  %v438 = vmax.f32 %v436, %v437
  %v439 = vsel %vm264, %v122, -inf
  %v440 = vsel %vm264, %v130, -inf
  %v441 = vmax.f32 %v439, %v440
  %v442 = vsel %vm264, %v123, -inf
  %v443 = vsel %vm264, %v131, -inf
  %v444 = vmax.f32 %v442, %v443
  %v445 = vsel %vm264, %v124, -inf
  %v446 = vsel %vm264, %v132, -inf
  %v447 = vmax.f32 %v445, %v446
  %v448 = vsel %vm264, %v125, -inf
  %v449 = vsel %vm264, %v133, -inf
  %v450 = vmax.f32 %v448, %v449
  %v451 = vsel %vm264, %v126, -inf
  %v452 = vsel %vm264, %v134, -inf
  %v453 = vmax.f32 %v451, %v452
  %v454 = vsel %vm264, %v127, -inf
  %v455 = vsel %vm264, %v135, -inf
  %v456 = vmax.f32 %v454, %v455
  %v457 = vsel %vm264, %v136, -inf
  %v458 = vsel %vm264, %v144, -inf
  %v459 = vmax.f32 %v457, %v458
  %v460 = vsel %vm264, %v137, -inf
  %v461 = vsel %vm264, %v145, -inf
  %v462 = vmax.f32 %v460, %v461
  %v463 = vsel %vm264, %v138, -inf
  %v464 = vsel %vm264, %v146, -inf
  %v465 = vmax.f32 %v463, %v464
  %v466 = vsel %vm264, %v139, -inf
  %v467 = vsel %vm264, %v147, -inf
  %v468 = vmax.f32 %v466, %v467
  %v469 = vsel %vm264, %v140, -inf
  %v470 = vsel %vm264, %v148, -inf
  %v471 = vmax.f32 %v469, %v470
  %v472 = vsel %vm264, %v141, -inf
  %v473 = vsel %vm264, %v149, -inf
  %v474 = vmax.f32 %v472, %v473
  %v475 = vsel %vm264, %v142, -inf
  %v476 = vsel %vm264, %v150, -inf
  %v477 = vmax.f32 %v475, %v476
  %v478 = vsel %vm264, %v143, -inf
  %v479 = vsel %vm264, %v151, -inf
  %v480 = vmax.f32 %v478, %v479
  %v481 = vsel %vm264, %v152, -inf
  %v482 = vsel %vm264, %v160, -inf
  %v483 = vmax.f32 %v481, %v482
  %v484 = vsel %vm264, %v153, -inf
  %v485 = vsel %vm264, %v161, -inf
  %v486 = vmax.f32 %v484, %v485
  %v487 = vsel %vm264, %v154, -inf
  %v488 = vsel %vm264, %v162, -inf
  %v489 = vmax.f32 %v487, %v488
  %v490 = vsel %vm264, %v155, -inf
  %v491 = vsel %vm264, %v163, -inf
  %v492 = vmax.f32 %v490, %v491
  %v493 = vsel %vm264, %v156, -inf
  %v494 = vsel %vm264, %v164, -inf
  %v495 = vmax.f32 %v493, %v494
  %v496 = vsel %vm264, %v157, -inf
  %v497 = vsel %vm264, %v165, -inf
  %v498 = vmax.f32 %v496, %v497
  %v499 = vsel %vm264, %v158, -inf
  %v500 = vsel %vm264, %v166, -inf
  %v501 = vmax.f32 %v499, %v500
  %v502 = vsel %vm264, %v159, -inf
  %v503 = vsel %vm264, %v167, -inf
  %v504 = vmax.f32 %v502, %v503
  %v505 = vsel %vm264, %v168, -inf
  %v506 = vsel %vm264, %v176, -inf
  %v507 = vmax.f32 %v505, %v506
  %v508 = vsel %vm264, %v169, -inf
  %v509 = vsel %vm264, %v177, -inf
  %v510 = vmax.f32 %v508, %v509
  %v511 = vsel %vm264, %v170, -inf
  %v512 = vsel %vm264, %v178, -inf
  %v513 = vmax.f32 %v511, %v512
  %v514 = vsel %vm264, %v171, -inf
  %v515 = vsel %vm264, %v179, -inf
  %v516 = vmax.f32 %v514, %v515
  %v517 = vsel %vm264, %v172, -inf
  %v518 = vsel %vm264, %v180, -inf
  %v519 = vmax.f32 %v517, %v518
  %v520 = vsel %vm264, %v173, -inf
  %v521 = vsel %vm264, %v181, -inf
  %v522 = vmax.f32 %v520, %v521
  %v523 = vsel %vm264, %v174, -inf
  %v524 = vsel %vm264, %v182, -inf
  %v525 = vmax.f32 %v523, %v524
  %v526 = vsel %vm264, %v175, -inf
  %v527 = vsel %vm264, %v183, -inf
  %v528 = vmax.f32 %v526, %v527
  %v529 = vsel %vm264, %v184, -inf
  %v530 = vsel %vm264, %v192, -inf
  %v531 = vmax.f32 %v529, %v530
  %v532 = vsel %vm264, %v185, -inf
  %v533 = vsel %vm264, %v193, -inf
  %v534 = vmax.f32 %v532, %v533
  %v535 = vsel %vm264, %v186, -inf
  %v536 = vsel %vm264, %v194, -inf
  %v537 = vmax.f32 %v535, %v536
  %v538 = vsel %vm264, %v187, -inf
  %v539 = vsel %vm264, %v195, -inf
  %v540 = vmax.f32 %v538, %v539
  %v541 = vsel %vm264, %v188, -inf
  %v542 = vsel %vm264, %v196, -inf
  %v543 = vmax.f32 %v541, %v542
  %v544 = vsel %vm264, %v189, -inf
  %v545 = vsel %vm264, %v197, -inf
  %v546 = vmax.f32 %v544, %v545
  %v547 = vsel %vm264, %v190, -inf
  %v548 = vsel %vm264, %v198, -inf
  %v549 = vmax.f32 %v547, %v548
  %v550 = vsel %vm264, %v191, -inf
  %v551 = vsel %vm264, %v199, -inf
  %v552 = vmax.f32 %v550, %v551
  %v553 = vsel %vm264, %v200, -inf
  %v554 = vsel %vm264, %v208, -inf
  %v555 = vmax.f32 %v553, %v554
  %v556 = vsel %vm264, %v201, -inf
  %v557 = vsel %vm264, %v209, -inf
  %v558 = vmax.f32 %v556, %v557
  %v559 = vsel %vm264, %v202, -inf
  %v560 = vsel %vm264, %v210, -inf
  %v561 = vmax.f32 %v559, %v560
  %v562 = vsel %vm264, %v203, -inf
  %v563 = vsel %vm264, %v211, -inf
  %v564 = vmax.f32 %v562, %v563
  %v565 = vsel %vm264, %v204, -inf
  %v566 = vsel %vm264, %v212, -inf
  %v567 = vmax.f32 %v565, %v566
  %v568 = vsel %vm264, %v205, -inf
  %v569 = vsel %vm264, %v213, -inf
  %v570 = vmax.f32 %v568, %v569
  %v571 = vsel %vm264, %v206, -inf
  %v572 = vsel %vm264, %v214, -inf
  %v573 = vmax.f32 %v571, %v572
  %v574 = vsel %vm264, %v207, -inf
  %v575 = vsel %vm264, %v215, -inf
  %v576 = vmax.f32 %v574, %v575
  %v577 = vsel %vm264, %v216, -inf
  %v578 = vsel %vm264, %v224, -inf
  %v579 = vmax.f32 %v577, %v578
  %v580 = vsel %vm264, %v217, -inf
  %v581 = vsel %vm264, %v225, -inf
  %v582 = vmax.f32 %v580, %v581
  %v583 = vsel %vm264, %v218, -inf
  %v584 = vsel %vm264, %v226, -inf
  %v585 = vmax.f32 %v583, %v584
  %v586 = vsel %vm264, %v219, -inf
  %v587 = vsel %vm264, %v227, -inf
  %v588 = vmax.f32 %v586, %v587
  %v589 = vsel %vm264, %v220, -inf
  %v590 = vsel %vm264, %v228, -inf
  %v591 = vmax.f32 %v589, %v590
  %v592 = vsel %vm264, %v221, -inf
  %v593 = vsel %vm264, %v229, -inf
  %v594 = vmax.f32 %v592, %v593
  %v595 = vsel %vm264, %v222, -inf
  %v596 = vsel %vm264, %v230, -inf
  %v597 = vmax.f32 %v595, %v596
  %v598 = vsel %vm264, %v223, -inf
  %v599 = vsel %vm264, %v231, -inf
  %v600 = vmax.f32 %v598, %v599
  %v601 = vsel %vm264, %v232, -inf
  %v602 = vsel %vm264, %v240, -inf
  %v603 = vmax.f32 %v601, %v602
  %v604 = vsel %vm264, %v233, -inf
  %v605 = vsel %vm264, %v241, -inf
  %v606 = vmax.f32 %v604, %v605
  %v607 = vsel %vm264, %v234, -inf
  %v608 = vsel %vm264, %v242, -inf
  %v609 = vmax.f32 %v607, %v608
  %v610 = vsel %vm264, %v235, -inf
  %v611 = vsel %vm264, %v243, -inf
  %v612 = vmax.f32 %v610, %v611
  %v613 = vsel %vm264, %v236, -inf
  %v614 = vsel %vm264, %v244, -inf
  %v615 = vmax.f32 %v613, %v614
  %v616 = vsel %vm264, %v237, -inf
  %v617 = vsel %vm264, %v245, -inf
  %v618 = vmax.f32 %v616, %v617
  %v619 = vsel %vm264, %v238, -inf
  %v620 = vsel %vm264, %v246, -inf
  %v621 = vmax.f32 %v619, %v620
  %v622 = vsel %vm264, %v239, -inf
  %v623 = vsel %vm264, %v247, -inf
  %v624 = vmax.f32 %v622, %v623
  %v625 = vsel %vm264, %v248, -inf
  %v626 = vsel %vm264, %v256, -inf
  %v627 = vmax.f32 %v625, %v626
  %v628 = vsel %vm264, %v249, -inf
  %v629 = vsel %vm264, %v257, -inf
  %v630 = vmax.f32 %v628, %v629
  %v631 = vsel %vm264, %v250, -inf
  %v632 = vsel %vm264, %v258, -inf
  %v633 = vmax.f32 %v631, %v632
  %v634 = vsel %vm264, %v251, -inf
  %v635 = vsel %vm264, %v259, -inf
  %v636 = vmax.f32 %v634, %v635
  %v637 = vsel %vm264, %v252, -inf
  %v638 = vsel %vm264, %v260, -inf
  %v639 = vmax.f32 %v637, %v638
  %v640 = vsel %vm264, %v253, -inf
  %v641 = vsel %vm264, %v261, -inf
  %v642 = vmax.f32 %v640, %v641
  %v643 = vsel %vm264, %v254, -inf
  %v644 = vsel %vm264, %v262, -inf
  %v645 = vmax.f32 %v643, %v644
  %v646 = vsel %vm264, %v255, -inf
  %v647 = vsel %vm264, %v263, -inf
  %v648 = vmax.f32 %v646, %v647
  %v649 = vsel %vm264, %v267, -inf
  %v650 = vrot.slane %v649, 4
  %v651 = vmax.f32 %v649, %v650
  %v652 = vrot.slane %v651, 2
  %v653 = vmax.f32 %v651, %v652
  %v654 = vrot.slane %v653, 1
  %v655 = vmax.f32 %v653, %v654
  %v656 = vsel %vm264, %v270, -inf
  %v657 = vrot.slane %v656, 4
  %v658 = vmax.f32 %v656, %v657
  %v659 = vrot.slane %v658, 2
  %v660 = vmax.f32 %v658, %v659
  %v661 = vrot.slane %v660, 1
  %v662 = vmax.f32 %v660, %v661
  %v663 = vsel %vm264, %v273, -inf
  %v664 = vrot.slane %v663, 4
  %v665 = vmax.f32 %v663, %v664
  %v666 = vrot.slane %v665, 2
  %v667 = vmax.f32 %v665, %v666
  %v668 = vrot.slane %v667, 1
  %v669 = vmax.f32 %v667, %v668
  %v670 = vsel %vm264, %v276, -inf
  %v671 = vrot.slane %v670, 4
  %v672 = vmax.f32 %v670, %v671
  %v673 = vrot.slane %v672, 2
  %v674 = vmax.f32 %v672, %v673
  %v675 = vrot.slane %v674, 1
  %v676 = vmax.f32 %v674, %v675
  %v677 = vsel %vm264, %v279, -inf
  %v678 = vrot.slane %v677, 4
  %v679 = vmax.f32 %v677, %v678
  %v680 = vrot.slane %v679, 2
  %v681 = vmax.f32 %v679, %v680
  %v682 = vrot.slane %v681, 1
  %v683 = vmax.f32 %v681, %v682
  %v684 = vsel %vm264, %v282, -inf
  %v685 = vrot.slane %v684, 4
  %v686 = vmax.f32 %v684, %v685
  %v687 = vrot.slane %v686, 2
  %v688 = vmax.f32 %v686, %v687
  %v689 = vrot.slane %v688, 1
  %v690 = vmax.f32 %v688, %v689
  %v691 = vsel %vm264, %v285, -inf
  %v692 = vrot.slane %v691, 4
  %v693 = vmax.f32 %v691, %v692
  %v694 = vrot.slane %v693, 2
  %v695 = vmax.f32 %v693, %v694
  %v696 = vrot.slane %v695, 1
  %v697 = vmax.f32 %v695, %v696
  %v698 = vsel %vm264, %v288, -inf
  %v699 = vrot.slane %v698, 4
  %v700 = vmax.f32 %v698, %v699
  %v701 = vrot.slane %v700, 2
  %v702 = vmax.f32 %v700, %v701
  %v703 = vrot.slane %v702, 1
  %v704 = vmax.f32 %v702, %v703
  %v705 = vsel %vm264, %v291, -inf
  %v706 = vrot.slane %v705, 4
  %v707 = vmax.f32 %v705, %v706
  %v708 = vrot.slane %v707, 2
  %v709 = vmax.f32 %v707, %v708
  %v710 = vrot.slane %v709, 1
  %v711 = vmax.f32 %v709, %v710
  %v712 = vsel %vm264, %v294, -inf
  %v713 = vrot.slane %v712, 4
  %v714 = vmax.f32 %v712, %v713
  %v715 = vrot.slane %v714, 2
  %v716 = vmax.f32 %v714, %v715
  %v717 = vrot.slane %v716, 1
  %v718 = vmax.f32 %v716, %v717
  %v719 = vsel %vm264, %v297, -inf
  %v720 = vrot.slane %v719, 4
  %v721 = vmax.f32 %v719, %v720
  %v722 = vrot.slane %v721, 2
  %v723 = vmax.f32 %v721, %v722
  %v724 = vrot.slane %v723, 1
  %v725 = vmax.f32 %v723, %v724
  %v726 = vsel %vm264, %v300, -inf
  %v727 = vrot.slane %v726, 4
  %v728 = vmax.f32 %v726, %v727
  %v729 = vrot.slane %v728, 2
  %v730 = vmax.f32 %v728, %v729
  %v731 = vrot.slane %v730, 1
  %v732 = vmax.f32 %v730, %v731
  %v733 = vsel %vm264, %v303, -inf
  %v734 = vrot.slane %v733, 4
  %v735 = vmax.f32 %v733, %v734
  %v736 = vrot.slane %v735, 2
  %v737 = vmax.f32 %v735, %v736
  %v738 = vrot.slane %v737, 1
  %v739 = vmax.f32 %v737, %v738
  %v740 = vsel %vm264, %v306, -inf
  %v741 = vrot.slane %v740, 4
  %v742 = vmax.f32 %v740, %v741
  %v743 = vrot.slane %v742, 2
  %v744 = vmax.f32 %v742, %v743
  %v745 = vrot.slane %v744, 1
  %v746 = vmax.f32 %v744, %v745
  %v747 = vsel %vm264, %v309, -inf
  %v748 = vrot.slane %v747, 4
  %v749 = vmax.f32 %v747, %v748
  %v750 = vrot.slane %v749, 2
  %v751 = vmax.f32 %v749, %v750
  %v752 = vrot.slane %v751, 1
  %v753 = vmax.f32 %v751, %v752
  %v754 = vsel %vm264, %v312, -inf
  %v755 = vrot.slane %v754, 4
  %v756 = vmax.f32 %v754, %v755
  %v757 = vrot.slane %v756, 2
  %v758 = vmax.f32 %v756, %v757
  %v759 = vrot.slane %v758, 1
  %v760 = vmax.f32 %v758, %v759
  %v761 = vsel %vm264, %v315, -inf
  %v762 = vrot.slane %v761, 4
  %v763 = vmax.f32 %v761, %v762
  %v764 = vrot.slane %v763, 2
  %v765 = vmax.f32 %v763, %v764
  %v766 = vrot.slane %v765, 1
  %v767 = vmax.f32 %v765, %v766
  %v768 = vsel %vm264, %v318, -inf
  %v769 = vrot.slane %v768, 4
  %v770 = vmax.f32 %v768, %v769
  %v771 = vrot.slane %v770, 2
  %v772 = vmax.f32 %v770, %v771
  %v773 = vrot.slane %v772, 1
  %v774 = vmax.f32 %v772, %v773
  %v775 = vsel %vm264, %v321, -inf
  %v776 = vrot.slane %v775, 4
  %v777 = vmax.f32 %v775, %v776
  %v778 = vrot.slane %v777, 2
  %v779 = vmax.f32 %v777, %v778
  %v780 = vrot.slane %v779, 1
  %v781 = vmax.f32 %v779, %v780
  %v782 = vsel %vm264, %v324, -inf
  %v783 = vrot.slane %v782, 4
  %v784 = vmax.f32 %v782, %v783
  %v785 = vrot.slane %v784, 2
  %v786 = vmax.f32 %v784, %v785
  %v787 = vrot.slane %v786, 1
  %v788 = vmax.f32 %v786, %v787
  %v789 = vsel %vm264, %v327, -inf
  %v790 = vrot.slane %v789, 4
  %v791 = vmax.f32 %v789, %v790
  %v792 = vrot.slane %v791, 2
  %v793 = vmax.f32 %v791, %v792
  %v794 = vrot.slane %v793, 1
  %v795 = vmax.f32 %v793, %v794
  %v796 = vsel %vm264, %v330, -inf
  %v797 = vrot.slane %v796, 4
  %v798 = vmax.f32 %v796, %v797
  %v799 = vrot.slane %v798, 2
  %v800 = vmax.f32 %v798, %v799
  %v801 = vrot.slane %v800, 1
  %v802 = vmax.f32 %v800, %v801
  %v803 = vsel %vm264, %v333, -inf
  %v804 = vrot.slane %v803, 4
  %v805 = vmax.f32 %v803, %v804
  %v806 = vrot.slane %v805, 2
  %v807 = vmax.f32 %v805, %v806
  %v808 = vrot.slane %v807, 1
  %v809 = vmax.f32 %v807, %v808
  %v810 = vsel %vm264, %v336, -inf
  %v811 = vrot.slane %v810, 4
  %v812 = vmax.f32 %v810, %v811
  %v813 = vrot.slane %v812, 2
  %v814 = vmax.f32 %v812, %v813
  %v815 = vrot.slane %v814, 1
  %v816 = vmax.f32 %v814, %v815
  %v817 = vsel %vm264, %v339, -inf
  %v818 = vrot.slane %v817, 4
  %v819 = vmax.f32 %v817, %v818
  %v820 = vrot.slane %v819, 2
  %v821 = vmax.f32 %v819, %v820
  %v822 = vrot.slane %v821, 1
  %v823 = vmax.f32 %v821, %v822
  %v824 = vsel %vm264, %v342, -inf
  %v825 = vrot.slane %v824, 4
  %v826 = vmax.f32 %v824, %v825
  %v827 = vrot.slane %v826, 2
  %v828 = vmax.f32 %v826, %v827
  %v829 = vrot.slane %v828, 1
  %v830 = vmax.f32 %v828, %v829
  %v831 = vsel %vm264, %v345, -inf
  %v832 = vrot.slane %v831, 4
  %v833 = vmax.f32 %v831, %v832
  %v834 = vrot.slane %v833, 2
  %v835 = vmax.f32 %v833, %v834
  %v836 = vrot.slane %v835, 1
  %v837 = vmax.f32 %v835, %v836
  %v838 = vsel %vm264, %v348, -inf
  %v839 = vrot.slane %v838, 4
  %v840 = vmax.f32 %v838, %v839
  %v841 = vrot.slane %v840, 2
  %v842 = vmax.f32 %v840, %v841
  %v843 = vrot.slane %v842, 1
  %v844 = vmax.f32 %v842, %v843
  %v845 = vsel %vm264, %v351, -inf
  %v846 = vrot.slane %v845, 4
  %v847 = vmax.f32 %v845, %v846
  %v848 = vrot.slane %v847, 2
  %v849 = vmax.f32 %v847, %v848
  %v850 = vrot.slane %v849, 1
  %v851 = vmax.f32 %v849, %v850
  %v852 = vsel %vm264, %v354, -inf
  %v853 = vrot.slane %v852, 4
  %v854 = vmax.f32 %v852, %v853
  %v855 = vrot.slane %v854, 2
  %v856 = vmax.f32 %v854, %v855
  %v857 = vrot.slane %v856, 1
  %v858 = vmax.f32 %v856, %v857
  %v859 = vsel %vm264, %v357, -inf
  %v860 = vrot.slane %v859, 4
  %v861 = vmax.f32 %v859, %v860
  %v862 = vrot.slane %v861, 2
  %v863 = vmax.f32 %v861, %v862
  %v864 = vrot.slane %v863, 1
  %v865 = vmax.f32 %v863, %v864
  %v866 = vsel %vm264, %v360, -inf
  %v867 = vrot.slane %v866, 4
  %v868 = vmax.f32 %v866, %v867
  %v869 = vrot.slane %v868, 2
  %v870 = vmax.f32 %v868, %v869
  %v871 = vrot.slane %v870, 1
  %v872 = vmax.f32 %v870, %v871
  %v873 = vsel %vm264, %v363, -inf
  %v874 = vrot.slane %v873, 4
  %v875 = vmax.f32 %v873, %v874
  %v876 = vrot.slane %v875, 2
  %v877 = vmax.f32 %v875, %v876
  %v878 = vrot.slane %v877, 1
  %v879 = vmax.f32 %v877, %v878
  %v880 = vsel %vm264, %v366, -inf
  %v881 = vrot.slane %v880, 4
  %v882 = vmax.f32 %v880, %v881
  %v883 = vrot.slane %v882, 2
  %v884 = vmax.f32 %v882, %v883
  %v885 = vrot.slane %v884, 1
  %v886 = vmax.f32 %v884, %v885
  %v887 = vsel %vm264, %v369, -inf
  %v888 = vrot.slane %v887, 4
  %v889 = vmax.f32 %v887, %v888
  %v890 = vrot.slane %v889, 2
  %v891 = vmax.f32 %v889, %v890
  %v892 = vrot.slane %v891, 1
  %v893 = vmax.f32 %v891, %v892
  %v894 = vsel %vm264, %v372, -inf
  %v895 = vrot.slane %v894, 4
  %v896 = vmax.f32 %v894, %v895
  %v897 = vrot.slane %v896, 2
  %v898 = vmax.f32 %v896, %v897
  %v899 = vrot.slane %v898, 1
  %v900 = vmax.f32 %v898, %v899
  %v901 = vsel %vm264, %v375, -inf
  %v902 = vrot.slane %v901, 4
  %v903 = vmax.f32 %v901, %v902
  %v904 = vrot.slane %v903, 2
  %v905 = vmax.f32 %v903, %v904
  %v906 = vrot.slane %v905, 1
  %v907 = vmax.f32 %v905, %v906
  %v908 = vsel %vm264, %v378, -inf
  %v909 = vrot.slane %v908, 4
  %v910 = vmax.f32 %v908, %v909
  %v911 = vrot.slane %v910, 2
  %v912 = vmax.f32 %v910, %v911
  %v913 = vrot.slane %v912, 1
  %v914 = vmax.f32 %v912, %v913
  %v915 = vsel %vm264, %v381, -inf
  %v916 = vrot.slane %v915, 4
  %v917 = vmax.f32 %v915, %v916
  %v918 = vrot.slane %v917, 2
  %v919 = vmax.f32 %v917, %v918
  %v920 = vrot.slane %v919, 1
  %v921 = vmax.f32 %v919, %v920
  %v922 = vsel %vm264, %v384, -inf
  %v923 = vrot.slane %v922, 4
  %v924 = vmax.f32 %v922, %v923
  %v925 = vrot.slane %v924, 2
  %v926 = vmax.f32 %v924, %v925
  %v927 = vrot.slane %v926, 1
  %v928 = vmax.f32 %v926, %v927
  %v929 = vsel %vm264, %v387, -inf
  %v930 = vrot.slane %v929, 4
  %v931 = vmax.f32 %v929, %v930
  %v932 = vrot.slane %v931, 2
  %v933 = vmax.f32 %v931, %v932
  %v934 = vrot.slane %v933, 1
  %v935 = vmax.f32 %v933, %v934
  %v936 = vsel %vm264, %v390, -inf
  %v937 = vrot.slane %v936, 4
  %v938 = vmax.f32 %v936, %v937
  %v939 = vrot.slane %v938, 2
  %v940 = vmax.f32 %v938, %v939
  %v941 = vrot.slane %v940, 1
  %v942 = vmax.f32 %v940, %v941
  %v943 = vsel %vm264, %v393, -inf
  %v944 = vrot.slane %v943, 4
  %v945 = vmax.f32 %v943, %v944
  %v946 = vrot.slane %v945, 2
  %v947 = vmax.f32 %v945, %v946
  %v948 = vrot.slane %v947, 1
  %v949 = vmax.f32 %v947, %v948
  %v950 = vsel %vm264, %v396, -inf
  %v951 = vrot.slane %v950, 4
  %v952 = vmax.f32 %v950, %v951
  %v953 = vrot.slane %v952, 2
  %v954 = vmax.f32 %v952, %v953
  %v955 = vrot.slane %v954, 1
  %v956 = vmax.f32 %v954, %v955
  %v957 = vsel %vm264, %v399, -inf
  %v958 = vrot.slane %v957, 4
  %v959 = vmax.f32 %v957, %v958
  %v960 = vrot.slane %v959, 2
  %v961 = vmax.f32 %v959, %v960
  %v962 = vrot.slane %v961, 1
  %v963 = vmax.f32 %v961, %v962
  %v964 = vsel %vm264, %v402, -inf
  %v965 = vrot.slane %v964, 4
  %v966 = vmax.f32 %v964, %v965
  %v967 = vrot.slane %v966, 2
  %v968 = vmax.f32 %v966, %v967
  %v969 = vrot.slane %v968, 1
  %v970 = vmax.f32 %v968, %v969
  %v971 = vsel %vm264, %v405, -inf
  %v972 = vrot.slane %v971, 4
  %v973 = vmax.f32 %v971, %v972
  %v974 = vrot.slane %v973, 2
  %v975 = vmax.f32 %v973, %v974
  %v976 = vrot.slane %v975, 1
  %v977 = vmax.f32 %v975, %v976
  %v978 = vsel %vm264, %v408, -inf
  %v979 = vrot.slane %v978, 4
  %v980 = vmax.f32 %v978, %v979
  %v981 = vrot.slane %v980, 2
  %v982 = vmax.f32 %v980, %v981
  %v983 = vrot.slane %v982, 1
  %v984 = vmax.f32 %v982, %v983
  %v985 = vsel %vm264, %v411, -inf
  %v986 = vrot.slane %v985, 4
  %v987 = vmax.f32 %v985, %v986
  %v988 = vrot.slane %v987, 2
  %v989 = vmax.f32 %v987, %v988
  %v990 = vrot.slane %v989, 1
  %v991 = vmax.f32 %v989, %v990
  %v992 = vsel %vm264, %v414, -inf
  %v993 = vrot.slane %v992, 4
  %v994 = vmax.f32 %v992, %v993
  %v995 = vrot.slane %v994, 2
  %v996 = vmax.f32 %v994, %v995
  %v997 = vrot.slane %v996, 1
  %v998 = vmax.f32 %v996, %v997
  %v999 = vsel %vm264, %v417, -inf
  %v1000 = vrot.slane %v999, 4
  %v1001 = vmax.f32 %v999, %v1000
  %v1002 = vrot.slane %v1001, 2
  %v1003 = vmax.f32 %v1001, %v1002
  %v1004 = vrot.slane %v1003, 1
  %v1005 = vmax.f32 %v1003, %v1004
  %v1006 = vsel %vm264, %v420, -inf
  %v1007 = vrot.slane %v1006, 4
  %v1008 = vmax.f32 %v1006, %v1007
  %v1009 = vrot.slane %v1008, 2
  %v1010 = vmax.f32 %v1008, %v1009
  %v1011 = vrot.slane %v1010, 1
  %v1012 = vmax.f32 %v1010, %v1011
  %v1013 = vsel %vm264, %v423, -inf
  %v1014 = vrot.slane %v1013, 4
  %v1015 = vmax.f32 %v1013, %v1014
  %v1016 = vrot.slane %v1015, 2
  %v1017 = vmax.f32 %v1015, %v1016
  %v1018 = vrot.slane %v1017, 1
  %v1019 = vmax.f32 %v1017, %v1018
  %v1020 = vsel %vm264, %v426, -inf
  %v1021 = vrot.slane %v1020, 4
  %v1022 = vmax.f32 %v1020, %v1021
  %v1023 = vrot.slane %v1022, 2
  %v1024 = vmax.f32 %v1022, %v1023
  %v1025 = vrot.slane %v1024, 1
  %v1026 = vmax.f32 %v1024, %v1025
  %v1027 = vsel %vm264, %v429, -inf
  %v1028 = vrot.slane %v1027, 4
  %v1029 = vmax.f32 %v1027, %v1028
  %v1030 = vrot.slane %v1029, 2
  %v1031 = vmax.f32 %v1029, %v1030
  %v1032 = vrot.slane %v1031, 1
  %v1033 = vmax.f32 %v1031, %v1032
  %v1034 = vsel %vm264, %v432, -inf
  %v1035 = vrot.slane %v1034, 4
  %v1036 = vmax.f32 %v1034, %v1035
  %v1037 = vrot.slane %v1036, 2
  %v1038 = vmax.f32 %v1036, %v1037
  %v1039 = vrot.slane %v1038, 1
  %v1040 = vmax.f32 %v1038, %v1039
  %v1041 = vsel %vm264, %v435, -inf
  %v1042 = vrot.slane %v1041, 4
  %v1043 = vmax.f32 %v1041, %v1042
  %v1044 = vrot.slane %v1043, 2
  %v1045 = vmax.f32 %v1043, %v1044
  %v1046 = vrot.slane %v1045, 1
  %v1047 = vmax.f32 %v1045, %v1046
  %v1048 = vsel %vm264, %v438, -inf
  %v1049 = vrot.slane %v1048, 4
  %v1050 = vmax.f32 %v1048, %v1049
  %v1051 = vrot.slane %v1050, 2
  %v1052 = vmax.f32 %v1050, %v1051
  %v1053 = vrot.slane %v1052, 1
  %v1054 = vmax.f32 %v1052, %v1053
  %v1055 = vsel %vm264, %v441, -inf
  %v1056 = vrot.slane %v1055, 4
  %v1057 = vmax.f32 %v1055, %v1056
  %v1058 = vrot.slane %v1057, 2
  %v1059 = vmax.f32 %v1057, %v1058
  %v1060 = vrot.slane %v1059, 1
  %v1061 = vmax.f32 %v1059, %v1060
  %v1062 = vsel %vm264, %v444, -inf
  %v1063 = vrot.slane %v1062, 4
  %v1064 = vmax.f32 %v1062, %v1063
  %v1065 = vrot.slane %v1064, 2
  %v1066 = vmax.f32 %v1064, %v1065
  %v1067 = vrot.slane %v1066, 1
  %v1068 = vmax.f32 %v1066, %v1067
  %v1069 = vsel %vm264, %v447, -inf
  %v1070 = vrot.slane %v1069, 4
  %v1071 = vmax.f32 %v1069, %v1070
  %v1072 = vrot.slane %v1071, 2
  %v1073 = vmax.f32 %v1071, %v1072
  %v1074 = vrot.slane %v1073, 1
  %v1075 = vmax.f32 %v1073, %v1074
  %v1076 = vsel %vm264, %v450, -inf
  %v1077 = vrot.slane %v1076, 4
  %v1078 = vmax.f32 %v1076, %v1077
  %v1079 = vrot.slane %v1078, 2
  %v1080 = vmax.f32 %v1078, %v1079
  %v1081 = vrot.slane %v1080, 1
  %v1082 = vmax.f32 %v1080, %v1081
  %v1083 = vsel %vm264, %v453, -inf
  %v1084 = vrot.slane %v1083, 4
  %v1085 = vmax.f32 %v1083, %v1084
  %v1086 = vrot.slane %v1085, 2
  %v1087 = vmax.f32 %v1085, %v1086
  %v1088 = vrot.slane %v1087, 1
  %v1089 = vmax.f32 %v1087, %v1088
  %v1090 = vsel %vm264, %v456, -inf
  %v1091 = vrot.slane %v1090, 4
  %v1092 = vmax.f32 %v1090, %v1091
  %v1093 = vrot.slane %v1092, 2
  %v1094 = vmax.f32 %v1092, %v1093
  %v1095 = vrot.slane %v1094, 1
  %v1096 = vmax.f32 %v1094, %v1095
  %v1097 = vsel %vm264, %v459, -inf
  %v1098 = vrot.slane %v1097, 4
  %v1099 = vmax.f32 %v1097, %v1098
  %v1100 = vrot.slane %v1099, 2
  %v1101 = vmax.f32 %v1099, %v1100
  %v1102 = vrot.slane %v1101, 1
  %v1103 = vmax.f32 %v1101, %v1102
  %v1104 = vsel %vm264, %v462, -inf
  %v1105 = vrot.slane %v1104, 4
  %v1106 = vmax.f32 %v1104, %v1105
  %v1107 = vrot.slane %v1106, 2
  %v1108 = vmax.f32 %v1106, %v1107
  %v1109 = vrot.slane %v1108, 1
  %v1110 = vmax.f32 %v1108, %v1109
  %v1111 = vsel %vm264, %v465, -inf
  %v1112 = vrot.slane %v1111, 4
  %v1113 = vmax.f32 %v1111, %v1112
  %v1114 = vrot.slane %v1113, 2
  %v1115 = vmax.f32 %v1113, %v1114
  %v1116 = vrot.slane %v1115, 1
  %v1117 = vmax.f32 %v1115, %v1116
  %v1118 = vsel %vm264, %v468, -inf
  %v1119 = vrot.slane %v1118, 4
  %v1120 = vmax.f32 %v1118, %v1119
  %v1121 = vrot.slane %v1120, 2
  %v1122 = vmax.f32 %v1120, %v1121
  %v1123 = vrot.slane %v1122, 1
  %v1124 = vmax.f32 %v1122, %v1123
  %v1125 = vsel %vm264, %v471, -inf
  %v1126 = vrot.slane %v1125, 4
  %v1127 = vmax.f32 %v1125, %v1126
  %v1128 = vrot.slane %v1127, 2
  %v1129 = vmax.f32 %v1127, %v1128
  %v1130 = vrot.slane %v1129, 1
  %v1131 = vmax.f32 %v1129, %v1130
  %v1132 = vsel %vm264, %v474, -inf
  %v1133 = vrot.slane %v1132, 4
  %v1134 = vmax.f32 %v1132, %v1133
  %v1135 = vrot.slane %v1134, 2
  %v1136 = vmax.f32 %v1134, %v1135
  %v1137 = vrot.slane %v1136, 1
  %v1138 = vmax.f32 %v1136, %v1137
  %v1139 = vsel %vm264, %v477, -inf
  %v1140 = vrot.slane %v1139, 4
  %v1141 = vmax.f32 %v1139, %v1140
  %v1142 = vrot.slane %v1141, 2
  %v1143 = vmax.f32 %v1141, %v1142
  %v1144 = vrot.slane %v1143, 1
  %v1145 = vmax.f32 %v1143, %v1144
  %v1146 = vsel %vm264, %v480, -inf
  %v1147 = vrot.slane %v1146, 4
  %v1148 = vmax.f32 %v1146, %v1147
  %v1149 = vrot.slane %v1148, 2
  %v1150 = vmax.f32 %v1148, %v1149
  %v1151 = vrot.slane %v1150, 1
  %v1152 = vmax.f32 %v1150, %v1151
  %v1153 = vsel %vm264, %v483, -inf
  %v1154 = vrot.slane %v1153, 4
  %v1155 = vmax.f32 %v1153, %v1154
  %v1156 = vrot.slane %v1155, 2
  %v1157 = vmax.f32 %v1155, %v1156
  %v1158 = vrot.slane %v1157, 1
  %v1159 = vmax.f32 %v1157, %v1158
  %v1160 = vsel %vm264, %v486, -inf
  %v1161 = vrot.slane %v1160, 4
  %v1162 = vmax.f32 %v1160, %v1161
  %v1163 = vrot.slane %v1162, 2
  %v1164 = vmax.f32 %v1162, %v1163
  %v1165 = vrot.slane %v1164, 1
  %v1166 = vmax.f32 %v1164, %v1165
  %v1167 = vsel %vm264, %v489, -inf
  %v1168 = vrot.slane %v1167, 4
  %v1169 = vmax.f32 %v1167, %v1168
  %v1170 = vrot.slane %v1169, 2
  %v1171 = vmax.f32 %v1169, %v1170
  %v1172 = vrot.slane %v1171, 1
  %v1173 = vmax.f32 %v1171, %v1172
  %v1174 = vsel %vm264, %v492, -inf
  %v1175 = vrot.slane %v1174, 4
  %v1176 = vmax.f32 %v1174, %v1175
  %v1177 = vrot.slane %v1176, 2
  %v1178 = vmax.f32 %v1176, %v1177
  %v1179 = vrot.slane %v1178, 1
  %v1180 = vmax.f32 %v1178, %v1179
  %v1181 = vsel %vm264, %v495, -inf
  %v1182 = vrot.slane %v1181, 4
  %v1183 = vmax.f32 %v1181, %v1182
  %v1184 = vrot.slane %v1183, 2
  %v1185 = vmax.f32 %v1183, %v1184
  %v1186 = vrot.slane %v1185, 1
  %v1187 = vmax.f32 %v1185, %v1186
  %v1188 = vsel %vm264, %v498, -inf
  %v1189 = vrot.slane %v1188, 4
  %v1190 = vmax.f32 %v1188, %v1189
  %v1191 = vrot.slane %v1190, 2
  %v1192 = vmax.f32 %v1190, %v1191
  %v1193 = vrot.slane %v1192, 1
  %v1194 = vmax.f32 %v1192, %v1193
  %v1195 = vsel %vm264, %v501, -inf
  %v1196 = vrot.slane %v1195, 4
  %v1197 = vmax.f32 %v1195, %v1196
  %v1198 = vrot.slane %v1197, 2
  %v1199 = vmax.f32 %v1197, %v1198
  %v1200 = vrot.slane %v1199, 1
  %v1201 = vmax.f32 %v1199, %v1200
  %v1202 = vsel %vm264, %v504, -inf
  %v1203 = vrot.slane %v1202, 4
  %v1204 = vmax.f32 %v1202, %v1203
  %v1205 = vrot.slane %v1204, 2
  %v1206 = vmax.f32 %v1204, %v1205
  %v1207 = vrot.slane %v1206, 1
  %v1208 = vmax.f32 %v1206, %v1207
  %v1209 = vsel %vm264, %v507, -inf
  %v1210 = vrot.slane %v1209, 4
  %v1211 = vmax.f32 %v1209, %v1210
  %v1212 = vrot.slane %v1211, 2
  %v1213 = vmax.f32 %v1211, %v1212
  %v1214 = vrot.slane %v1213, 1
  %v1215 = vmax.f32 %v1213, %v1214
  %v1216 = vsel %vm264, %v510, -inf
  %v1217 = vrot.slane %v1216, 4
  %v1218 = vmax.f32 %v1216, %v1217
  %v1219 = vrot.slane %v1218, 2
  %v1220 = vmax.f32 %v1218, %v1219
  %v1221 = vrot.slane %v1220, 1
  %v1222 = vmax.f32 %v1220, %v1221
  %v1223 = vsel %vm264, %v513, -inf
  %v1224 = vrot.slane %v1223, 4
  %v1225 = vmax.f32 %v1223, %v1224
  %v1226 = vrot.slane %v1225, 2
  %v1227 = vmax.f32 %v1225, %v1226
  %v1228 = vrot.slane %v1227, 1
  %v1229 = vmax.f32 %v1227, %v1228
  %v1230 = vsel %vm264, %v516, -inf
  %v1231 = vrot.slane %v1230, 4
  %v1232 = vmax.f32 %v1230, %v1231
  %v1233 = vrot.slane %v1232, 2
  %v1234 = vmax.f32 %v1232, %v1233
  %v1235 = vrot.slane %v1234, 1
  %v1236 = vmax.f32 %v1234, %v1235
  %v1237 = vsel %vm264, %v519, -inf
  %v1238 = vrot.slane %v1237, 4
  %v1239 = vmax.f32 %v1237, %v1238
  %v1240 = vrot.slane %v1239, 2
  %v1241 = vmax.f32 %v1239, %v1240
  %v1242 = vrot.slane %v1241, 1
  %v1243 = vmax.f32 %v1241, %v1242
  %v1244 = vsel %vm264, %v522, -inf
  %v1245 = vrot.slane %v1244, 4
  %v1246 = vmax.f32 %v1244, %v1245
  %v1247 = vrot.slane %v1246, 2
  %v1248 = vmax.f32 %v1246, %v1247
  %v1249 = vrot.slane %v1248, 1
  %v1250 = vmax.f32 %v1248, %v1249
  %v1251 = vsel %vm264, %v525, -inf
  %v1252 = vrot.slane %v1251, 4
  %v1253 = vmax.f32 %v1251, %v1252
  %v1254 = vrot.slane %v1253, 2
  %v1255 = vmax.f32 %v1253, %v1254
  %v1256 = vrot.slane %v1255, 1
  %v1257 = vmax.f32 %v1255, %v1256
  %v1258 = vsel %vm264, %v528, -inf
  %v1259 = vrot.slane %v1258, 4
  %v1260 = vmax.f32 %v1258, %v1259
  %v1261 = vrot.slane %v1260, 2
  %v1262 = vmax.f32 %v1260, %v1261
  %v1263 = vrot.slane %v1262, 1
  %v1264 = vmax.f32 %v1262, %v1263
  %v1265 = vsel %vm264, %v531, -inf
  %v1266 = vrot.slane %v1265, 4
  %v1267 = vmax.f32 %v1265, %v1266
  %v1268 = vrot.slane %v1267, 2
  %v1269 = vmax.f32 %v1267, %v1268
  %v1270 = vrot.slane %v1269, 1
  %v1271 = vmax.f32 %v1269, %v1270
  %v1272 = vsel %vm264, %v534, -inf
  %v1273 = vrot.slane %v1272, 4
  %v1274 = vmax.f32 %v1272, %v1273
  %v1275 = vrot.slane %v1274, 2
  %v1276 = vmax.f32 %v1274, %v1275
  %v1277 = vrot.slane %v1276, 1
  %v1278 = vmax.f32 %v1276, %v1277
  %v1279 = vsel %vm264, %v537, -inf
  %v1280 = vrot.slane %v1279, 4
  %v1281 = vmax.f32 %v1279, %v1280
  %v1282 = vrot.slane %v1281, 2
  %v1283 = vmax.f32 %v1281, %v1282
  %v1284 = vrot.slane %v1283, 1
  %v1285 = vmax.f32 %v1283, %v1284
  %v1286 = vsel %vm264, %v540, -inf
  %v1287 = vrot.slane %v1286, 4
  %v1288 = vmax.f32 %v1286, %v1287
  %v1289 = vrot.slane %v1288, 2
  %v1290 = vmax.f32 %v1288, %v1289
  %v1291 = vrot.slane %v1290, 1
  %v1292 = vmax.f32 %v1290, %v1291
  %v1293 = vsel %vm264, %v543, -inf
  %v1294 = vrot.slane %v1293, 4
  %v1295 = vmax.f32 %v1293, %v1294
  %v1296 = vrot.slane %v1295, 2
  %v1297 = vmax.f32 %v1295, %v1296
  %v1298 = vrot.slane %v1297, 1
  %v1299 = vmax.f32 %v1297, %v1298
  %v1300 = vsel %vm264, %v546, -inf
  %v1301 = vrot.slane %v1300, 4
  %v1302 = vmax.f32 %v1300, %v1301
  %v1303 = vrot.slane %v1302, 2
  %v1304 = vmax.f32 %v1302, %v1303
  %v1305 = vrot.slane %v1304, 1
  %v1306 = vmax.f32 %v1304, %v1305
  %v1307 = vsel %vm264, %v549, -inf
  %v1308 = vrot.slane %v1307, 4
  %v1309 = vmax.f32 %v1307, %v1308
  %v1310 = vrot.slane %v1309, 2
  %v1311 = vmax.f32 %v1309, %v1310
  %v1312 = vrot.slane %v1311, 1
  %v1313 = vmax.f32 %v1311, %v1312
  %v1314 = vsel %vm264, %v552, -inf
  %v1315 = vrot.slane %v1314, 4
  %v1316 = vmax.f32 %v1314, %v1315
  %v1317 = vrot.slane %v1316, 2
  %v1318 = vmax.f32 %v1316, %v1317
  %v1319 = vrot.slane %v1318, 1
  %v1320 = vmax.f32 %v1318, %v1319
  %v1321 = vsel %vm264, %v555, -inf
  %v1322 = vrot.slane %v1321, 4
  %v1323 = vmax.f32 %v1321, %v1322
  %v1324 = vrot.slane %v1323, 2
  %v1325 = vmax.f32 %v1323, %v1324
  %v1326 = vrot.slane %v1325, 1
  %v1327 = vmax.f32 %v1325, %v1326
  %v1328 = vsel %vm264, %v558, -inf
  %v1329 = vrot.slane %v1328, 4
  %v1330 = vmax.f32 %v1328, %v1329
  %v1331 = vrot.slane %v1330, 2
  %v1332 = vmax.f32 %v1330, %v1331
  %v1333 = vrot.slane %v1332, 1
  %v1334 = vmax.f32 %v1332, %v1333
  %v1335 = vsel %vm264, %v561, -inf
  %v1336 = vrot.slane %v1335, 4
  %v1337 = vmax.f32 %v1335, %v1336
  %v1338 = vrot.slane %v1337, 2
  %v1339 = vmax.f32 %v1337, %v1338
  %v1340 = vrot.slane %v1339, 1
  %v1341 = vmax.f32 %v1339, %v1340
  %v1342 = vsel %vm264, %v564, -inf
  %v1343 = vrot.slane %v1342, 4
  %v1344 = vmax.f32 %v1342, %v1343
  %v1345 = vrot.slane %v1344, 2
  %v1346 = vmax.f32 %v1344, %v1345
  %v1347 = vrot.slane %v1346, 1
  %v1348 = vmax.f32 %v1346, %v1347
  %v1349 = vsel %vm264, %v567, -inf
  %v1350 = vrot.slane %v1349, 4
  %v1351 = vmax.f32 %v1349, %v1350
  %v1352 = vrot.slane %v1351, 2
  %v1353 = vmax.f32 %v1351, %v1352
  %v1354 = vrot.slane %v1353, 1
  %v1355 = vmax.f32 %v1353, %v1354
  %v1356 = vsel %vm264, %v570, -inf
  %v1357 = vrot.slane %v1356, 4
  %v1358 = vmax.f32 %v1356, %v1357
  %v1359 = vrot.slane %v1358, 2
  %v1360 = vmax.f32 %v1358, %v1359
  %v1361 = vrot.slane %v1360, 1
  %v1362 = vmax.f32 %v1360, %v1361
  %v1363 = vsel %vm264, %v573, -inf
  %v1364 = vrot.slane %v1363, 4
  %v1365 = vmax.f32 %v1363, %v1364
  %v1366 = vrot.slane %v1365, 2
  %v1367 = vmax.f32 %v1365, %v1366
  %v1368 = vrot.slane %v1367, 1
  %v1369 = vmax.f32 %v1367, %v1368
  %v1370 = vsel %vm264, %v576, -inf
  %v1371 = vrot.slane %v1370, 4
  %v1372 = vmax.f32 %v1370, %v1371
  %v1373 = vrot.slane %v1372, 2
  %v1374 = vmax.f32 %v1372, %v1373
  %v1375 = vrot.slane %v1374, 1
  %v1376 = vmax.f32 %v1374, %v1375
  %v1377 = vsel %vm264, %v579, -inf
  %v1378 = vrot.slane %v1377, 4
  %v1379 = vmax.f32 %v1377, %v1378
  %v1380 = vrot.slane %v1379, 2
  %v1381 = vmax.f32 %v1379, %v1380
  %v1382 = vrot.slane %v1381, 1
  %v1383 = vmax.f32 %v1381, %v1382
  %v1384 = vsel %vm264, %v582, -inf
  %v1385 = vrot.slane %v1384, 4
  %v1386 = vmax.f32 %v1384, %v1385
  %v1387 = vrot.slane %v1386, 2
  %v1388 = vmax.f32 %v1386, %v1387
  %v1389 = vrot.slane %v1388, 1
  %v1390 = vmax.f32 %v1388, %v1389
  %v1391 = vsel %vm264, %v585, -inf
  %v1392 = vrot.slane %v1391, 4
  %v1393 = vmax.f32 %v1391, %v1392
  %v1394 = vrot.slane %v1393, 2
  %v1395 = vmax.f32 %v1393, %v1394
  %v1396 = vrot.slane %v1395, 1
  %v1397 = vmax.f32 %v1395, %v1396
  %v1398 = vsel %vm264, %v588, -inf
  %v1399 = vrot.slane %v1398, 4
  %v1400 = vmax.f32 %v1398, %v1399
  %v1401 = vrot.slane %v1400, 2
  %v1402 = vmax.f32 %v1400, %v1401
  %v1403 = vrot.slane %v1402, 1
  %v1404 = vmax.f32 %v1402, %v1403
  %v1405 = vsel %vm264, %v591, -inf
  %v1406 = vrot.slane %v1405, 4
  %v1407 = vmax.f32 %v1405, %v1406
  %v1408 = vrot.slane %v1407, 2
  %v1409 = vmax.f32 %v1407, %v1408
  %v1410 = vrot.slane %v1409, 1
  %v1411 = vmax.f32 %v1409, %v1410
  %v1412 = vsel %vm264, %v594, -inf
  %v1413 = vrot.slane %v1412, 4
  %v1414 = vmax.f32 %v1412, %v1413
  %v1415 = vrot.slane %v1414, 2
  %v1416 = vmax.f32 %v1414, %v1415
  %v1417 = vrot.slane %v1416, 1
  %v1418 = vmax.f32 %v1416, %v1417
  %v1419 = vsel %vm264, %v597, -inf
  %v1420 = vrot.slane %v1419, 4
  %v1421 = vmax.f32 %v1419, %v1420
  %v1422 = vrot.slane %v1421, 2
  %v1423 = vmax.f32 %v1421, %v1422
  %v1424 = vrot.slane %v1423, 1
  %v1425 = vmax.f32 %v1423, %v1424
  %v1426 = vsel %vm264, %v600, -inf
  %v1427 = vrot.slane %v1426, 4
  %v1428 = vmax.f32 %v1426, %v1427
  %v1429 = vrot.slane %v1428, 2
  %v1430 = vmax.f32 %v1428, %v1429
  %v1431 = vrot.slane %v1430, 1
  %v1432 = vmax.f32 %v1430, %v1431
  %v1433 = vsel %vm264, %v603, -inf
  %v1434 = vrot.slane %v1433, 4
  %v1435 = vmax.f32 %v1433, %v1434
  %v1436 = vrot.slane %v1435, 2
  %v1437 = vmax.f32 %v1435, %v1436
  %v1438 = vrot.slane %v1437, 1
  %v1439 = vmax.f32 %v1437, %v1438
  %v1440 = vsel %vm264, %v606, -inf
  %v1441 = vrot.slane %v1440, 4
  %v1442 = vmax.f32 %v1440, %v1441
  %v1443 = vrot.slane %v1442, 2
  %v1444 = vmax.f32 %v1442, %v1443
  %v1445 = vrot.slane %v1444, 1
  %v1446 = vmax.f32 %v1444, %v1445
  %v1447 = vsel %vm264, %v609, -inf
  %v1448 = vrot.slane %v1447, 4
  %v1449 = vmax.f32 %v1447, %v1448
  %v1450 = vrot.slane %v1449, 2
  %v1451 = vmax.f32 %v1449, %v1450
  %v1452 = vrot.slane %v1451, 1
  %v1453 = vmax.f32 %v1451, %v1452
  %v1454 = vsel %vm264, %v612, -inf
  %v1455 = vrot.slane %v1454, 4
  %v1456 = vmax.f32 %v1454, %v1455
  %v1457 = vrot.slane %v1456, 2
  %v1458 = vmax.f32 %v1456, %v1457
  %v1459 = vrot.slane %v1458, 1
  %v1460 = vmax.f32 %v1458, %v1459
  %v1461 = vsel %vm264, %v615, -inf
  %v1462 = vrot.slane %v1461, 4
  %v1463 = vmax.f32 %v1461, %v1462
  %v1464 = vrot.slane %v1463, 2
  %v1465 = vmax.f32 %v1463, %v1464
  %v1466 = vrot.slane %v1465, 1
  %v1467 = vmax.f32 %v1465, %v1466
  %v1468 = vsel %vm264, %v618, -inf
  %v1469 = vrot.slane %v1468, 4
  %v1470 = vmax.f32 %v1468, %v1469
  %v1471 = vrot.slane %v1470, 2
  %v1472 = vmax.f32 %v1470, %v1471
  %v1473 = vrot.slane %v1472, 1
  %v1474 = vmax.f32 %v1472, %v1473
  %v1475 = vsel %vm264, %v621, -inf
  %v1476 = vrot.slane %v1475, 4
  %v1477 = vmax.f32 %v1475, %v1476
  %v1478 = vrot.slane %v1477, 2
  %v1479 = vmax.f32 %v1477, %v1478
  %v1480 = vrot.slane %v1479, 1
  %v1481 = vmax.f32 %v1479, %v1480
  %v1482 = vsel %vm264, %v624, -inf
  %v1483 = vrot.slane %v1482, 4
  %v1484 = vmax.f32 %v1482, %v1483
  %v1485 = vrot.slane %v1484, 2
  %v1486 = vmax.f32 %v1484, %v1485
  %v1487 = vrot.slane %v1486, 1
  %v1488 = vmax.f32 %v1486, %v1487
  %v1489 = vsel %vm264, %v627, -inf
  %v1490 = vrot.slane %v1489, 4
  %v1491 = vmax.f32 %v1489, %v1490
  %v1492 = vrot.slane %v1491, 2
  %v1493 = vmax.f32 %v1491, %v1492
  %v1494 = vrot.slane %v1493, 1
  %v1495 = vmax.f32 %v1493, %v1494
  %v1496 = vsel %vm264, %v630, -inf
  %v1497 = vrot.slane %v1496, 4
  %v1498 = vmax.f32 %v1496, %v1497
  %v1499 = vrot.slane %v1498, 2
  %v1500 = vmax.f32 %v1498, %v1499
  %v1501 = vrot.slane %v1500, 1
  %v1502 = vmax.f32 %v1500, %v1501
  %v1503 = vsel %vm264, %v633, -inf
  %v1504 = vrot.slane %v1503, 4
  %v1505 = vmax.f32 %v1503, %v1504
  %v1506 = vrot.slane %v1505, 2
  %v1507 = vmax.f32 %v1505, %v1506
  %v1508 = vrot.slane %v1507, 1
  %v1509 = vmax.f32 %v1507, %v1508
  %v1510 = vsel %vm264, %v636, -inf
  %v1511 = vrot.slane %v1510, 4
  %v1512 = vmax.f32 %v1510, %v1511
  %v1513 = vrot.slane %v1512, 2
  %v1514 = vmax.f32 %v1512, %v1513
  %v1515 = vrot.slane %v1514, 1
  %v1516 = vmax.f32 %v1514, %v1515
  %v1517 = vsel %vm264, %v639, -inf
  %v1518 = vrot.slane %v1517, 4
  %v1519 = vmax.f32 %v1517, %v1518
  %v1520 = vrot.slane %v1519, 2
  %v1521 = vmax.f32 %v1519, %v1520
  %v1522 = vrot.slane %v1521, 1
  %v1523 = vmax.f32 %v1521, %v1522
  %v1524 = vsel %vm264, %v642, -inf
  %v1525 = vrot.slane %v1524, 4
  %v1526 = vmax.f32 %v1524, %v1525
  %v1527 = vrot.slane %v1526, 2
  %v1528 = vmax.f32 %v1526, %v1527
  %v1529 = vrot.slane %v1528, 1
  %v1530 = vmax.f32 %v1528, %v1529
  %v1531 = vsel %vm264, %v645, -inf
  %v1532 = vrot.slane %v1531, 4
  %v1533 = vmax.f32 %v1531, %v1532
  %v1534 = vrot.slane %v1533, 2
  %v1535 = vmax.f32 %v1533, %v1534
  %v1536 = vrot.slane %v1535, 1
  %v1537 = vmax.f32 %v1535, %v1536
  %v1538 = vsel %vm264, %v648, -inf
  %v1539 = vrot.slane %v1538, 4
  %v1540 = vmax.f32 %v1538, %v1539
  %v1541 = vrot.slane %v1540, 2
  %v1542 = vmax.f32 %v1540, %v1541
  %v1543 = vrot.slane %v1542, 1
  %v1544 = vmax.f32 %v1542, %v1543
  %vm1673 = vcmask 1041409
  %v1674 = vsel %vm1673, %v662, %v655
  %vm1675 = vcmask 1042434
  %v1676 = vsel %vm1675, %v669, %v1674
  %vm1677 = vcmask 1043459
  %v1678 = vsel %vm1677, %v676, %v1676
  %vm1679 = vcmask 1044484
  %v1680 = vsel %vm1679, %v683, %v1678
  %vm1681 = vcmask 1045509
  %v1682 = vsel %vm1681, %v690, %v1680
  %vm1683 = vcmask 1046534
  %v1684 = vsel %vm1683, %v697, %v1682
  %vm1685 = vcmask 1047559
  %v1686 = vsel %vm1685, %v704, %v1684
  %v1687 = vsel %vm1673, %v718, %v711
  %v1688 = vsel %vm1675, %v725, %v1687
  %v1689 = vsel %vm1677, %v732, %v1688
  %v1690 = vsel %vm1679, %v739, %v1689
  %v1691 = vsel %vm1681, %v746, %v1690
  %v1692 = vsel %vm1683, %v753, %v1691
  %v1693 = vsel %vm1685, %v760, %v1692
  %v1694 = vsel %vm1673, %v774, %v767
  %v1695 = vsel %vm1675, %v781, %v1694
  %v1696 = vsel %vm1677, %v788, %v1695
  %v1697 = vsel %vm1679, %v795, %v1696
  %v1698 = vsel %vm1681, %v802, %v1697
  %v1699 = vsel %vm1683, %v809, %v1698
  %v1700 = vsel %vm1685, %v816, %v1699
  %v1701 = vsel %vm1673, %v830, %v823
  %v1702 = vsel %vm1675, %v837, %v1701
  %v1703 = vsel %vm1677, %v844, %v1702
  %v1704 = vsel %vm1679, %v851, %v1703
  %v1705 = vsel %vm1681, %v858, %v1704
  %v1706 = vsel %vm1683, %v865, %v1705
  %v1707 = vsel %vm1685, %v872, %v1706
  %v1708 = vsel %vm1673, %v886, %v879
  %v1709 = vsel %vm1675, %v893, %v1708
  %v1710 = vsel %vm1677, %v900, %v1709
  %v1711 = vsel %vm1679, %v907, %v1710
  %v1712 = vsel %vm1681, %v914, %v1711
  %v1713 = vsel %vm1683, %v921, %v1712
  %v1714 = vsel %vm1685, %v928, %v1713
  %v1715 = vsel %vm1673, %v942, %v935
  %v1716 = vsel %vm1675, %v949, %v1715
  %v1717 = vsel %vm1677, %v956, %v1716
  %v1718 = vsel %vm1679, %v963, %v1717
  %v1719 = vsel %vm1681, %v970, %v1718
  %v1720 = vsel %vm1683, %v977, %v1719
  %v1721 = vsel %vm1685, %v984, %v1720
  %v1722 = vsel %vm1673, %v998, %v991
  %v1723 = vsel %vm1675, %v1005, %v1722
  %v1724 = vsel %vm1677, %v1012, %v1723
  %v1725 = vsel %vm1679, %v1019, %v1724
  %v1726 = vsel %vm1681, %v1026, %v1725
  %v1727 = vsel %vm1683, %v1033, %v1726
  %v1728 = vsel %vm1685, %v1040, %v1727
  %v1729 = vsel %vm1673, %v1054, %v1047
  %v1730 = vsel %vm1675, %v1061, %v1729
  %v1731 = vsel %vm1677, %v1068, %v1730
  %v1732 = vsel %vm1679, %v1075, %v1731
  %v1733 = vsel %vm1681, %v1082, %v1732
  %v1734 = vsel %vm1683, %v1089, %v1733
  %v1735 = vsel %vm1685, %v1096, %v1734
  %v1736 = vsel %vm1673, %v1110, %v1103
  %v1737 = vsel %vm1675, %v1117, %v1736
  %v1738 = vsel %vm1677, %v1124, %v1737
  %v1739 = vsel %vm1679, %v1131, %v1738
  %v1740 = vsel %vm1681, %v1138, %v1739
  %v1741 = vsel %vm1683, %v1145, %v1740
  %v1742 = vsel %vm1685, %v1152, %v1741
  %v1743 = vsel %vm1673, %v1166, %v1159
  %v1744 = vsel %vm1675, %v1173, %v1743
  %v1745 = vsel %vm1677, %v1180, %v1744
  %v1746 = vsel %vm1679, %v1187, %v1745
  %v1747 = vsel %vm1681, %v1194, %v1746
  %v1748 = vsel %vm1683, %v1201, %v1747
  %v1749 = vsel %vm1685, %v1208, %v1748
  %v1750 = vsel %vm1673, %v1222, %v1215
  %v1751 = vsel %vm1675, %v1229, %v1750
  %v1752 = vsel %vm1677, %v1236, %v1751
  %v1753 = vsel %vm1679, %v1243, %v1752
  %v1754 = vsel %vm1681, %v1250, %v1753
  %v1755 = vsel %vm1683, %v1257, %v1754
  %v1756 = vsel %vm1685, %v1264, %v1755
  %v1757 = vsel %vm1673, %v1278, %v1271
  %v1758 = vsel %vm1675, %v1285, %v1757
  %v1759 = vsel %vm1677, %v1292, %v1758
  %v1760 = vsel %vm1679, %v1299, %v1759
  %v1761 = vsel %vm1681, %v1306, %v1760
  %v1762 = vsel %vm1683, %v1313, %v1761
  %v1763 = vsel %vm1685, %v1320, %v1762
  %v1764 = vsel %vm1673, %v1334, %v1327
  %v1765 = vsel %vm1675, %v1341, %v1764
  %v1766 = vsel %vm1677, %v1348, %v1765
  %v1767 = vsel %vm1679, %v1355, %v1766
  %v1768 = vsel %vm1681, %v1362, %v1767
  %v1769 = vsel %vm1683, %v1369, %v1768
  %v1770 = vsel %vm1685, %v1376, %v1769
  %v1771 = vsel %vm1673, %v1390, %v1383
  %v1772 = vsel %vm1675, %v1397, %v1771
  %v1773 = vsel %vm1677, %v1404, %v1772
  %v1774 = vsel %vm1679, %v1411, %v1773
  %v1775 = vsel %vm1681, %v1418, %v1774
  %v1776 = vsel %vm1683, %v1425, %v1775
  %v1777 = vsel %vm1685, %v1432, %v1776
  %v1778 = vsel %vm1673, %v1446, %v1439
  %v1779 = vsel %vm1675, %v1453, %v1778
  %v1780 = vsel %vm1677, %v1460, %v1779
  %v1781 = vsel %vm1679, %v1467, %v1780
  %v1782 = vsel %vm1681, %v1474, %v1781
  %v1783 = vsel %vm1683, %v1481, %v1782
  %v1784 = vsel %vm1685, %v1488, %v1783
  %v1785 = vsel %vm1673, %v1502, %v1495
  %v1786 = vsel %vm1675, %v1509, %v1785
  %v1787 = vsel %vm1677, %v1516, %v1786
  %v1788 = vsel %vm1679, %v1523, %v1787
  %v1789 = vsel %vm1681, %v1530, %v1788
  %v1790 = vsel %vm1683, %v1537, %v1789
  %v1791 = vsel %vm1685, %v1544, %v1790
  %vm1808 = vcmask 31744
  %1809 = vst.msk [vmem:[%s1] sm:$0xff] %vm1808, %v1686
  %1810 = vst.msk [vmem:[%s1 + $0x8] sm:$0xff] %vm1808, %v1693
  %1811 = vst.msk [vmem:[%s1 + $0x10] sm:$0xff] %vm1808, %v1700
  %1812 = vst.msk [vmem:[%s1 + $0x18] sm:$0xff] %vm1808, %v1707
  %1813 = vst.msk [vmem:[%s1 + $0x20] sm:$0xff] %vm1808, %v1714
  %1814 = vst.msk [vmem:[%s1 + $0x28] sm:$0xff] %vm1808, %v1721
  %1815 = vst.msk [vmem:[%s1 + $0x30] sm:$0xff] %vm1808, %v1728
  %1816 = vst.msk [vmem:[%s1 + $0x38] sm:$0xff] %vm1808, %v1735
  %1817 = vst.msk [vmem:[%s1 + $0x40] sm:$0xff] %vm1808, %v1742
  %1818 = vst.msk [vmem:[%s1 + $0x48] sm:$0xff] %vm1808, %v1749
  %1819 = vst.msk [vmem:[%s1 + $0x50] sm:$0xff] %vm1808, %v1756
  %1820 = vst.msk [vmem:[%s1 + $0x58] sm:$0xff] %vm1808, %v1763
  %1821 = vst.msk [vmem:[%s1 + $0x60] sm:$0xff] %vm1808, %v1770
  %1822 = vst.msk [vmem:[%s1 + $0x68] sm:$0xff] %vm1808, %v1777
  %1823 = vst.msk [vmem:[%s1 + $0x70] sm:$0xff] %vm1808, %v1784
  %1824 = vst.msk [vmem:[%s1 + $0x78] sm:$0xff] %vm1808, %v1791
  // Predicated region
  $region6: #{tpu_custom_call.1} parent=0 // pred_check
    _
  $region7: #{tpu_custom_call.1} parent=0 // pred_check_branch
    %1826 = sbr.rel (0) target = $region9
  $region8: #{tpu_custom_call.1} parent=0 // pred_region
    _
  $region9: #{tpu_custom_call.1} parent=0 // pred_fallthru
    _
  // Predicated region
  $region10: #{tpu_custom_call.1} parent=0 // pred_check
    _
  $region11: #{tpu_custom_call.1} parent=0 // pred_check_branch
    %1828 = sbr.rel (0) target = $region13
  $region12: #{tpu_custom_call.1} parent=0 // pred_region
    _
  $region13: #{tpu_custom_call.1} parent=0 // pred_fallthru
    _

</llo_original>
